<compile_context>
chip_gen: v5e
topology: v5e:2x2
jax: 0.10.0
libtpu: 0.0.40
codegen_flags: <defaults>
</compile_context>

<pallas_src>
import numpy as np
import jax
import jax.numpy as jnp
from jax.experimental import pallas as pl
from jax.experimental.pallas import tpu as pltpu

_SUBLANE = 8
_LANE = 128


def _round_up(x, m):
    return ((x + m - 1) // m) * m


def _pad_to(x, shape):
    return jnp.pad(x, [(0, t - s) for s, t in zip(x.shape, shape)])


def _pick_vocab_tile(V, cap):
    """Largest multiple-of-128 divisor of V that is <= cap (fallback: V)."""
    t = min(cap, V)
    t -= t % _LANE
    while t >= _LANE:
        if V % t == 0:
            return t
        t -= _LANE
    return V


def _full_spec(shape):
    """Whole-array block with a constant index map (fetched once, stays in VMEM)."""
    nd = len(shape)
    return pl.BlockSpec(shape, lambda j, _nd=nd: (0,) * _nd)


# --------------------------------------------------------------------------
# Fused Pallas kernel: all GRU layers (one step) + 3-layer vocab head,
# vocab-tiled over grid axis j.
# --------------------------------------------------------------------------
def make_fused_decoder_kernel(n_layers, Hp):
    """Ref order: x(Bp,emb), h(L,Bp,Hp),
       per layer: w_i(In,3Hp) bf16, w_h(Hp,3Hp) bf16, b_i(1,3Hp) f32, b_hn(1,Hp) f32,
       head trunk: w1(Hp,2H) bf16, b1, w2(2H,4H) bf16, b2,
       tiled head: w3(4H,TV) bf16, b3(1,TV),
       outputs: pred(Bp,TV), hnew(L,Bp,Hp), scratch: h2(Bp,4H)."""
    n_in = 2 + 4 * n_layers + 6

    def kernel(*refs):
        x_ref, h_ref = refs[0], refs[1]
        layer_refs = refs[2:2 + 4 * n_layers]
        w1_ref, b1_ref, w2_ref, b2_ref, w3_ref, b3_ref = refs[2 + 4 * n_layers:n_in]
        pred_ref, hnew_ref, h2_sc = refs[n_in], refs[n_in + 1], refs[n_in + 2]

        f32, bf16 = jnp.float32, jnp.bfloat16
        j = pl.program_id(0)

        # GRU stack + head trunk computed once (first vocab tile); result kept in
        # VMEM scratch / the resident hnew output block for all remaining tiles.
        @pl.when(j == 0)
        def _():
            x = x_ref[...]                                   # (Bp, emb) f32
            for L in range(n_layers):                        # unrolled at trace time
                wi_ref, wh_ref, bi_ref, bhn_ref = layer_refs[4 * L:4 * L + 4]
                h = h_ref[L]                                 # (Bp, Hp) f32
                # bf16 MXU matmuls with f32 accumulation; gate math in f32 (VPU).
                gi = jnp.dot(x.astype(bf16), wi_ref[...],
                             preferred_element_type=f32) + bi_ref[...]
                gh = jnp.dot(h.astype(bf16), wh_ref[...],
                             preferred_element_type=f32)
                # 128-aligned gate slices (gate order r|z|n, each Hp lanes wide).
                r = jax.nn.sigmoid(gi[:, 0:Hp] + gh[:, 0:Hp])
                z = jax.nn.sigmoid(gi[:, Hp:2 * Hp] + gh[:, Hp:2 * Hp])
                n = jnp.tanh(gi[:, 2 * Hp:3 * Hp]
                             + r * (gh[:, 2 * Hp:3 * Hp] + bhn_ref[...]))
                h_new = (1.0 - z) * n + z * h                # PyTorch GRU blend
                hnew_ref[L] = h_new.astype(hnew_ref.dtype)
                x = h_new                                    # feeds next layer (VMEM)

            # Head trunk (embedding2vocab1 -> embedding2vocab2) into scratch.
            h1 = jnp.dot(x.astype(bf16), w1_ref[...],
                         preferred_element_type=f32) + b1_ref[...]
            h2_sc[...] = jnp.dot(h1.astype(bf16), w2_ref[...],
                                 preferred_element_type=f32) + b2_ref[...]

        # Per-tile embedding2vocab3: h2 @ w3_tile (bf16 weight stream is the
        # dominant HBM traffic and is double-buffered by the pipeline).
        pred_ref[...] = (jnp.dot(h2_sc[...].astype(bf16), w3_ref[...],
                                 preferred_element_type=f32)
                         + b3_ref[...]).astype(pred_ref.dtype)

    return kernel


# --------------------------------------------------------------------------
# Wrapper around pallas_call
# --------------------------------------------------------------------------
def fused_decoder_step(params, input_ids, hidden, *, tv_cap=512):
    """input_ids: (B,) int32 token ids; hidden: (n_layers, B, H) f32."""
    n_layers = len(params["gru"])
    L, B, H = hidden.shape
    Hp = params["gru"][0]["b_hn"].shape[1]          # lane-padded hidden width
    emb_dim = params["embedding"].shape[1]
    w3 = params["head"]["w3"]
    K3, V = w3.shape                                # K3 == 4*H
    Bp = max(_SUBLANE, _round_up(B, _SUBLANE))
    TV = _pick_vocab_tile(V, tv_cap)                # raise tv_cap toward 2048 on v5e/v6e
    grid = (V // TV,)

    # Batch pad folded into the gather; hidden zero-padded to (L, Bp, Hp).
    ids_pad = jnp.zeros((Bp,), input_ids.dtype).at[:B].set(input_ids)
    x_pad = params["embedding"][ids_pad]                            # (Bp, emb)
    h_pad = jnp.pad(hidden, ((0, 0), (0, Bp - B), (0, Hp - H)))     # (L, Bp, Hp)

    args = [x_pad, h_pad]
    for lp in params["gru"]:
        args += [lp["w_i"], lp["w_h"], lp["b_i"], lp["b_hn"]]
    hd = params["head"]
    args += [hd["w1"], hd["b1"], hd["w2"], hd["b2"], hd["w3"], hd["b3"]]

    # Resident (fetched-once) inputs get whole-array blocks; w3/b3/pred are
    # tiled along the vocab axis.
    in_specs = [_full_spec(a.shape) for a in args[:-2]]
    in_specs += [pl.BlockSpec((K3, TV), lambda j: (0, j)),      # w3 tile (bf16)
                 pl.BlockSpec((1, TV), lambda j: (0, j))]       # b3 tile
    out_specs = (pl.BlockSpec((Bp, TV), lambda j: (0, j)),      # pred tile
                 _full_spec((L, Bp, Hp)))                       # hnew (resident)

    # Advisory cost estimate + explicit VMEM budget (fits v7x's 64 MiB).
    resident_bytes = sum(int(np.prod(a.shape)) * a.dtype.itemsize for a in args[:-2])
    tile_bytes = K3 * TV * 2 + TV * 4 + Bp * TV * 4
    vmem_limit = int(min(64 << 20,
                         max(16 << 20, 2 * (2 * resident_bytes + 2 * tile_bytes) + (1 << 20))))

    flops, in_dim = 0, emb_dim
    for _ in range(n_layers):
        flops += 2 * Bp * (in_dim * 3 * Hp + Hp * 3 * Hp)
        in_dim = Hp
    flops += 2 * Bp * (Hp * hd["w1"].shape[1] + hd["w2"].shape[0] * hd["w2"].shape[1] + K3 * V)
    transcendentals = n_layers * Bp * 3 * Hp
    bytes_accessed = (resident_bytes + K3 * V * 2 + V * 4
                      + Bp * V * 4 + L * Bp * Hp * 4)

    pred_pad, hnew_pad = pl.pallas_call(
        make_fused_decoder_kernel(n_layers, Hp),
        grid=grid,
        in_specs=in_specs,
        out_specs=out_specs,
        out_shape=(jax.ShapeDtypeStruct((Bp, V), jnp.float32),
                   jax.ShapeDtypeStruct((L, Bp, Hp), jnp.float32)),
        scratch_shapes=[pltpu.VMEM((Bp, K3), jnp.float32)],
        input_output_aliases={1: 1},            # h_pad -> hnew written in place
        compiler_params=pltpu.CompilerParams(
            dimension_semantics=("arbitrary",),  # see v7x TODO at top
            vmem_limit_bytes=vmem_limit),
        cost_estimate=pl.CostEstimate(flops=int(flops),
                                      transcendentals=int(transcendentals),
                                      bytes_accessed=int(bytes_accessed)),
    )(*args)
    return pred_pad[:B], hnew_pad[:, :B, :H]


# --------------------------------------------------------------------------
# Parameter init (deterministic, PyTorch-like init, lane-padded bf16 weights)
# --------------------------------------------------------------------------
def init_params(key, cn_vocab_size, emb_dim, hid_dim, n_layers):
    H = hid_dim * 2                      # self.hid_dim = hid_dim * 2 in the Decoder
    Hp = _round_up(H, _LANE)             # lane-aligned gate width
    keys = iter(jax.random.split(key, 64))

    def unif(k, shape, bound):
        return jax.random.uniform(k, shape, jnp.float32, -bound, bound)

    params = {"embedding": jax.random.normal(next(keys), (cn_vocab_size, emb_dim),
                                             jnp.float32)}

    def gate_pad_w(w_t, rows_pad):       # (In, 3H) -> (rows_pad, 3*Hp), zero padding
        return jnp.concatenate(
            [_pad_to(w_t[:, g * H:(g + 1) * H], (rows_pad, Hp)) for g in range(3)], axis=1)

    def gate_pad_b(b):                   # (3H,) -> (1, 3*Hp), zero padding
        return jnp.concatenate(
            [_pad_to(b[g * H:(g + 1) * H][None, :], (1, Hp)) for g in range(3)], axis=1)

    gru_layers = []
    kb = 1.0 / np.sqrt(H)
    for layer in range(n_layers):
        in_dim = emb_dim if layer == 0 else H
        in_pad = emb_dim if layer == 0 else Hp
        # PyTorch stores weight_ih_l{k} as (3H, In) in gate order r,z,n.
        w_ih = unif(next(keys), (3 * H, in_dim), kb)
        w_hh = unif(next(keys), (3 * H, H), kb)
        b_ih = unif(next(keys), (3 * H,), kb)
        b_hh = unif(next(keys), (3 * H,), kb)
        # Pre-sum r/z biases (b_in + b_hn stays split because of r*(...)).
        b_sum = b_ih + b_hh
        gru_layers.append({
            "w_i": gate_pad_w(w_ih.T, in_pad).astype(jnp.bfloat16),   # (In|Hp, 3Hp)
            "w_h": gate_pad_w(w_hh.T, Hp).astype(jnp.bfloat16),       # (Hp, 3Hp)
            "b_i": gate_pad_b(jnp.concatenate([b_sum[:2 * H], b_ih[2 * H:]])),  # (1,3Hp) f32
            "b_hn": _pad_to(b_hh[2 * H:][None, :], (1, Hp)),          # (1, Hp)  f32
        })
    params["gru"] = gru_layers

    def linear(k1, k2, in_dim, out_dim, in_pad=None):
        kb_ = 1.0 / np.sqrt(in_dim)
        w = unif(k1, (in_dim, out_dim), kb_)
        b = unif(k2, (1, out_dim), kb_)
        if in_pad is not None:
            w = _pad_to(w, (in_pad, out_dim))
        return w.astype(jnp.bfloat16), b

    params["head"] = {}
    params["head"]["w1"], params["head"]["b1"] = linear(next(keys), next(keys), H, 2 * H, in_pad=Hp)
    params["head"]["w2"], params["head"]["b2"] = linear(next(keys), next(keys), 2 * H, 4 * H)
    params["head"]["w3"], params["head"]["b3"] = linear(next(keys), next(keys), 4 * H, cn_vocab_size)
    return params


# --------------------------------------------------------------------------
# Decoder forward (fused Pallas) and pure-JAX reference
# --------------------------------------------------------------------------
@jax.jit
def decoder_forward(params, input_ids, hidden, encoder_outputs):
    # Attention.forward returns None (isatt=False) -> encoder_outputs unused.
    del encoder_outputs
    return fused_decoder_step(params, input_ids, hidden)


def decoder_forward_ref(params, input_ids, hidden, encoder_outputs):
    """f32 reference using the same (bf16-rounded) weights; padded lanes stay 0."""
    del encoder_outputs
    L, B, H = hidden.shape
    Hp = params["gru"][0]["b_hn"].shape[1]
    x = params["embedding"][input_ids]
    h_all = jnp.pad(hidden, ((0, 0), (0, 0), (0, Hp - H)))
    new_hidden = []
    for layer, lp in enumerate(params["gru"]):
        h = h_all[layer]
        gi = x @ lp["w_i"].astype(jnp.float32) + lp["b_i"]
        gh = h @ lp["w_h"].astype(jnp.float32)
        r = jax.nn.sigmoid(gi[:, :Hp] + gh[:, :Hp])
        z = jax.nn.sigmoid(gi[:, Hp:2 * Hp] + gh[:, Hp:2 * Hp])
        n = jnp.tanh(gi[:, 2 * Hp:] + r * (gh[:, 2 * Hp:] + lp["b_hn"]))
        h_new = (1.0 - z) * n + z * h
        new_hidden.append(h_new[:, :H])
        x = h_new
    p = params["head"]
    pred = ((x @ p["w1"].astype(jnp.float32) + p["b1"])
            @ p["w2"].astype(jnp.float32) + p["b2"]) @ p["w3"].astype(jnp.float32) + p["b3"]
    return pred, jnp.stack(new_hidden, axis=0)


# --------------------------------------------------------------------------
if __name__ == "__main__":
    cn_vocab_size = 2048   # multiple of 128 -> 4 vocab tiles of 512 with tv_cap=512
    emb_dim = 32
    hid_dim = 16           # -> decoder hid_dim H = 32 (lane-padded to Hp = 128)
    n_layers = 2
    batch = 4
    src_len = 8
    H = hid_dim * 2

    key = jax.random.PRNGKey(0)
    kp, ki, kh, ke = jax.random.split(key, 4)

    params = init_params(kp, cn_vocab_size, emb_dim, hid_dim, n_layers)

    input_ids = jax.random.randint(ki, (batch,), 0, cn_vocab_size)              # (B,)
    hidden = jax.random.normal(kh, (n_layers, batch, H), jnp.float32)           # (L, B, H)
    encoder_outputs = jax.random.normal(ke, (batch, src_len, H), jnp.float32)   # unused

    pred, new_hidden = decoder_forward(params, input_ids, hidden, encoder_outputs)
    pred = jax.block_until_ready(pred)
    new_hidden = jax.block_until_ready(new_hidden)

    pred_ref, hidden_ref = decoder_forward_ref(params, input_ids, hidden, encoder_outputs)

    assert pred.shape == (batch, cn_vocab_size)
    assert new_hidden.shape == (n_layers, batch, H)
    # bf16 weight storage + bf16 matmul operands -> looser tolerance vs f32 math.
    np.testing.assert_allclose(np.asarray(pred), np.asarray(pred_ref), rtol=2e-2, atol=2e-2)
    np.testing.assert_allclose(np.asarray(new_hidden), np.asarray(hidden_ref), rtol=2e-2, atol=2e-2)

    print("KERNEL_OK")
</pallas_src>

<mosaic_0001>
module attributes {stable_mosaic.version = 11 : i64} {
  func.func @kernel(%arg0: i32, %arg1: memref<8x32xf32, #tpu.memory_space<vmem>>, %arg2: memref<2x8x128xf32, #tpu.memory_space<vmem>>, %arg3: memref<32x384xbf16, #tpu.memory_space<vmem>>, %arg4: memref<128x384xbf16, #tpu.memory_space<vmem>>, %arg5: memref<1x384xf32, #tpu.memory_space<vmem>>, %arg6: memref<1x128xf32, #tpu.memory_space<vmem>>, %arg7: memref<128x384xbf16, #tpu.memory_space<vmem>>, %arg8: memref<128x384xbf16, #tpu.memory_space<vmem>>, %arg9: memref<1x384xf32, #tpu.memory_space<vmem>>, %arg10: memref<1x128xf32, #tpu.memory_space<vmem>>, %arg11: memref<128x64xbf16, #tpu.memory_space<vmem>>, %arg12: memref<1x64xf32, #tpu.memory_space<vmem>>, %arg13: memref<64x128xbf16, #tpu.memory_space<vmem>>, %arg14: memref<1x128xf32, #tpu.memory_space<vmem>>, %arg15: memref<128x512xbf16, #tpu.memory_space<vmem>>, %arg16: memref<1x512xf32, #tpu.memory_space<vmem>>, %arg17: memref<8x512xf32, #tpu.memory_space<vmem>>, %arg18: memref<2x8x128xf32, #tpu.memory_space<vmem>>, %arg19: memref<8x128xf32, #tpu.memory_space<vmem>>) attributes {dimension_semantics = [#tpu.dimension_semantics<arbitrary>], iteration_bounds = array<i64: 4>, scalar_prefetch = 0 : i64, scratch_operands = 1 : i64, tpu.core_type = #tpu.core_type<tc>, window_params = [{pipeline_mode = #tpu.pipeline_mode<synchronous>, transform_indices = @transform_0, window_bounds = array<i64: 8, 32>}, {pipeline_mode = #tpu.pipeline_mode<synchronous>, transform_indices = @transform_1, window_bounds = array<i64: 2, 8, 128>}, {pipeline_mode = #tpu.pipeline_mode<synchronous>, transform_indices = @transform_2, window_bounds = array<i64: 32, 384>}, {pipeline_mode = #tpu.pipeline_mode<synchronous>, transform_indices = @transform_3, window_bounds = array<i64: 128, 384>}, {pipeline_mode = #tpu.pipeline_mode<synchronous>, transform_indices = @transform_4, window_bounds = array<i64: 1, 384>}, {pipeline_mode = #tpu.pipeline_mode<synchronous>, transform_indices = @transform_5, window_bounds = array<i64: 1, 128>}, {pipeline_mode = #tpu.pipeline_mode<synchronous>, transform_indices = @transform_6, window_bounds = array<i64: 128, 384>}, {pipeline_mode = #tpu.pipeline_mode<synchronous>, transform_indices = @transform_7, window_bounds = array<i64: 128, 384>}, {pipeline_mode = #tpu.pipeline_mode<synchronous>, transform_indices = @transform_8, window_bounds = array<i64: 1, 384>}, {pipeline_mode = #tpu.pipeline_mode<synchronous>, transform_indices = @transform_9, window_bounds = array<i64: 1, 128>}, {pipeline_mode = #tpu.pipeline_mode<synchronous>, transform_indices = @transform_10, window_bounds = array<i64: 128, 64>}, {pipeline_mode = #tpu.pipeline_mode<synchronous>, transform_indices = @transform_11, window_bounds = array<i64: 1, 64>}, {pipeline_mode = #tpu.pipeline_mode<synchronous>, transform_indices = @transform_12, window_bounds = array<i64: 64, 128>}, {pipeline_mode = #tpu.pipeline_mode<synchronous>, transform_indices = @transform_13, window_bounds = array<i64: 1, 128>}, {transform_indices = @transform_14, window_bounds = array<i64: 128, 512>}, {transform_indices = @transform_15, window_bounds = array<i64: 1, 512>}, {transform_indices = @transform_16, window_bounds = array<i64: 8, 512>}, {pipeline_mode = #tpu.pipeline_mode<synchronous>, transform_indices = @transform_17, window_bounds = array<i64: 2, 8, 128>}]} {
    %c0_i32 = arith.constant 0 : i32
    %0 = arith.cmpi eq, %arg0, %c0_i32 : i32
    %1 = arith.extui %0 : i1 to i32
    %c0_i32_0 = arith.constant 0 : i32
    %2 = arith.cmpi ne, %1, %c0_i32_0 : i32
    scf.if %2 {
      %c0_8 = arith.constant 0 : index
      %c0_9 = arith.constant 0 : index
      %11 = vector.load %arg1[%c0_8, %c0_9] : memref<8x32xf32, #tpu.memory_space<vmem>>, vector<8x32xf32>
      %c0_10 = arith.constant 0 : index
      %c0_11 = arith.constant 0 : index
      %c0_12 = arith.constant 0 : index
      %12 = vector.load %arg2[%c0_10, %c0_11, %c0_12] : memref<2x8x128xf32, #tpu.memory_space<vmem>>, vector<1x8x128xf32>
      %13 = vector.shape_cast %12 : vector<1x8x128xf32> to vector<8x128xf32>
      %14 = arith.truncf %11 : vector<8x32xf32> to vector<8x32xbf16>
      %c0_13 = arith.constant 0 : index
      %c0_14 = arith.constant 0 : index
      %15 = vector.load %arg3[%c0_13, %c0_14] : memref<32x384xbf16, #tpu.memory_space<vmem>>, vector<32x384xbf16>
      %cst_15 = arith.constant dense<0.000000e+00> : vector<8x384xf32>
      %16 = tpu.matmul %14, %15, %cst_15 {dimension_numbers = #tpu.dot_dimension_numbers<[1], [0], [0], [1], [0, 0, 1, 1], [], []>} : vector<8x32xbf16>, vector<32x384xbf16>, vector<8x384xf32> -> vector<8x384xf32>
      %c0_16 = arith.constant 0 : index
      %c0_17 = arith.constant 0 : index
      %17 = vector.load %arg5[%c0_16, %c0_17] : memref<1x384xf32, #tpu.memory_space<vmem>>, vector<1x384xf32>
      %18 = vector.broadcast %17 : vector<1x384xf32> to vector<8x384xf32>
      %19 = arith.addf %16, %18 : vector<8x384xf32>
      %20 = arith.truncf %13 : vector<8x128xf32> to vector<8x128xbf16>
      %c0_18 = arith.constant 0 : index
      %c0_19 = arith.constant 0 : index
      %21 = vector.load %arg4[%c0_18, %c0_19] : memref<128x384xbf16, #tpu.memory_space<vmem>>, vector<128x384xbf16>
      %cst_20 = arith.constant dense<0.000000e+00> : vector<8x384xf32>
      %22 = tpu.matmul %20, %21, %cst_20 {dimension_numbers = #tpu.dot_dimension_numbers<[1], [0], [0], [1], [0, 0, 1, 1], [], []>} : vector<8x128xbf16>, vector<128x384xbf16>, vector<8x384xf32> -> vector<8x384xf32>
      %23 = vector.extract_strided_slice %19 {offsets = [0, 0], sizes = [8, 128], strides = [1, 1]} : vector<8x384xf32> to vector<8x128xf32>
      %24 = vector.extract_strided_slice %22 {offsets = [0, 0], sizes = [8, 128], strides = [1, 1]} : vector<8x384xf32> to vector<8x128xf32>
      %25 = arith.addf %23, %24 : vector<8x128xf32>
      %26 = arith.negf %25 : vector<8x128xf32>
      %27 = math.exp %26 : vector<8x128xf32>
      %cst_21 = arith.constant 1.000000e+00 : f32
      %28 = vector.broadcast %cst_21 : f32 to vector<8x128xf32>
      %29 = arith.addf %28, %27 : vector<8x128xf32>
      %30 = arith.divf %28, %29 : vector<8x128xf32>
      %31 = vector.extract_strided_slice %19 {offsets = [0, 128], sizes = [8, 128], strides = [1, 1]} : vector<8x384xf32> to vector<8x128xf32>
      %32 = vector.extract_strided_slice %22 {offsets = [0, 128], sizes = [8, 128], strides = [1, 1]} : vector<8x384xf32> to vector<8x128xf32>
      %33 = arith.addf %31, %32 : vector<8x128xf32>
      %34 = arith.negf %33 : vector<8x128xf32>
      %35 = math.exp %34 : vector<8x128xf32>
      %cst_22 = arith.constant 1.000000e+00 : f32
      %36 = vector.broadcast %cst_22 : f32 to vector<8x128xf32>
      %37 = arith.addf %36, %35 : vector<8x128xf32>
      %38 = arith.divf %36, %37 : vector<8x128xf32>
      %39 = vector.extract_strided_slice %19 {offsets = [0, 256], sizes = [8, 128], strides = [1, 1]} : vector<8x384xf32> to vector<8x128xf32>
      %40 = vector.extract_strided_slice %22 {offsets = [0, 256], sizes = [8, 128], strides = [1, 1]} : vector<8x384xf32> to vector<8x128xf32>
      %c0_23 = arith.constant 0 : index
      %c0_24 = arith.constant 0 : index
      %41 = vector.load %arg6[%c0_23, %c0_24] : memref<1x128xf32, #tpu.memory_space<vmem>>, vector<1x128xf32>
      %42 = vector.broadcast %41 : vector<1x128xf32> to vector<8x128xf32>
      %43 = arith.addf %40, %42 : vector<8x128xf32>
      %44 = arith.mulf %30, %43 : vector<8x128xf32>
      %45 = arith.addf %39, %44 : vector<8x128xf32>
      %46 = math.tanh %45 : vector<8x128xf32>
      %cst_25 = arith.constant 1.000000e+00 : f32
      %47 = vector.broadcast %cst_25 : f32 to vector<8x128xf32>
      %48 = arith.subf %47, %38 : vector<8x128xf32>
      %49 = arith.mulf %48, %46 : vector<8x128xf32>
      %50 = arith.mulf %38, %13 : vector<8x128xf32>
      %51 = arith.addf %49, %50 : vector<8x128xf32>
      %c0_26 = arith.constant 0 : index
      %c0_27 = arith.constant 0 : index
      %c0_28 = arith.constant 0 : index
      %52 = vector.load %arg18[%c0_26, %c0_27, %c0_28] : memref<2x8x128xf32, #tpu.memory_space<vmem>>, vector<1x8x128xf32>
      %53 = vector.shape_cast %52 : vector<1x8x128xf32> to vector<8x128xf32>
      %54 = vector.shape_cast %51 : vector<8x128xf32> to vector<1x8x128xf32>
      tpu.vector_store %arg18[%c0_26, %c0_27, %c0_28], %54 {strides = array<i32>} : memref<2x8x128xf32, #tpu.memory_space<vmem>>, vector<1x8x128xf32>,
      %c1 = arith.constant 1 : index
      %c0_29 = arith.constant 0 : index
      %c0_30 = arith.constant 0 : index
      %55 = vector.load %arg2[%c1, %c0_29, %c0_30] : memref<2x8x128xf32, #tpu.memory_space<vmem>>, vector<1x8x128xf32>
      %56 = vector.shape_cast %55 : vector<1x8x128xf32> to vector<8x128xf32>
      %57 = arith.truncf %51 : vector<8x128xf32> to vector<8x128xbf16>
      %c0_31 = arith.constant 0 : index
      %c0_32 = arith.constant 0 : index
      %58 = vector.load %arg7[%c0_31, %c0_32] : memref<128x384xbf16, #tpu.memory_space<vmem>>, vector<128x384xbf16>
      %cst_33 = arith.constant dense<0.000000e+00> : vector<8x384xf32>
      %59 = tpu.matmul %57, %58, %cst_33 {dimension_numbers = #tpu.dot_dimension_numbers<[1], [0], [0], [1], [0, 0, 1, 1], [], []>} : vector<8x128xbf16>, vector<128x384xbf16>, vector<8x384xf32> -> vector<8x384xf32>
      %c0_34 = arith.constant 0 : index
      %c0_35 = arith.constant 0 : index
      %60 = vector.load %arg9[%c0_34, %c0_35] : memref<1x384xf32, #tpu.memory_space<vmem>>, vector<1x384xf32>
      %61 = vector.broadcast %60 : vector<1x384xf32> to vector<8x384xf32>
      %62 = arith.addf %59, %61 : vector<8x384xf32>
      %63 = arith.truncf %56 : vector<8x128xf32> to vector<8x128xbf16>
      %c0_36 = arith.constant 0 : index
      %c0_37 = arith.constant 0 : index
      %64 = vector.load %arg8[%c0_36, %c0_37] : memref<128x384xbf16, #tpu.memory_space<vmem>>, vector<128x384xbf16>
      %cst_38 = arith.constant dense<0.000000e+00> : vector<8x384xf32>
      %65 = tpu.matmul %63, %64, %cst_38 {dimension_numbers = #tpu.dot_dimension_numbers<[1], [0], [0], [1], [0, 0, 1, 1], [], []>} : vector<8x128xbf16>, vector<128x384xbf16>, vector<8x384xf32> -> vector<8x384xf32>
      %66 = vector.extract_strided_slice %62 {offsets = [0, 0], sizes = [8, 128], strides = [1, 1]} : vector<8x384xf32> to vector<8x128xf32>
      %67 = vector.extract_strided_slice %65 {offsets = [0, 0], sizes = [8, 128], strides = [1, 1]} : vector<8x384xf32> to vector<8x128xf32>
      %68 = arith.addf %66, %67 : vector<8x128xf32>
      %69 = arith.negf %68 : vector<8x128xf32>
      %70 = math.exp %69 : vector<8x128xf32>
      %cst_39 = arith.constant 1.000000e+00 : f32
      %71 = vector.broadcast %cst_39 : f32 to vector<8x128xf32>
      %72 = arith.addf %71, %70 : vector<8x128xf32>
      %73 = arith.divf %71, %72 : vector<8x128xf32>
      %74 = vector.extract_strided_slice %62 {offsets = [0, 128], sizes = [8, 128], strides = [1, 1]} : vector<8x384xf32> to vector<8x128xf32>
      %75 = vector.extract_strided_slice %65 {offsets = [0, 128], sizes = [8, 128], strides = [1, 1]} : vector<8x384xf32> to vector<8x128xf32>
      %76 = arith.addf %74, %75 : vector<8x128xf32>
      %77 = arith.negf %76 : vector<8x128xf32>
      %78 = math.exp %77 : vector<8x128xf32>
      %cst_40 = arith.constant 1.000000e+00 : f32
      %79 = vector.broadcast %cst_40 : f32 to vector<8x128xf32>
      %80 = arith.addf %79, %78 : vector<8x128xf32>
      %81 = arith.divf %79, %80 : vector<8x128xf32>
      %82 = vector.extract_strided_slice %62 {offsets = [0, 256], sizes = [8, 128], strides = [1, 1]} : vector<8x384xf32> to vector<8x128xf32>
      %83 = vector.extract_strided_slice %65 {offsets = [0, 256], sizes = [8, 128], strides = [1, 1]} : vector<8x384xf32> to vector<8x128xf32>
      %c0_41 = arith.constant 0 : index
      %c0_42 = arith.constant 0 : index
      %84 = vector.load %arg10[%c0_41, %c0_42] : memref<1x128xf32, #tpu.memory_space<vmem>>, vector<1x128xf32>
      %85 = vector.broadcast %84 : vector<1x128xf32> to vector<8x128xf32>
      %86 = arith.addf %83, %85 : vector<8x128xf32>
      %87 = arith.mulf %73, %86 : vector<8x128xf32>
      %88 = arith.addf %82, %87 : vector<8x128xf32>
      %89 = math.tanh %88 : vector<8x128xf32>
      %cst_43 = arith.constant 1.000000e+00 : f32
      %90 = vector.broadcast %cst_43 : f32 to vector<8x128xf32>
      %91 = arith.subf %90, %81 : vector<8x128xf32>
      %92 = arith.mulf %91, %89 : vector<8x128xf32>
      %93 = arith.mulf %81, %56 : vector<8x128xf32>
      %94 = arith.addf %92, %93 : vector<8x128xf32>
      %c1_44 = arith.constant 1 : index
      %c0_45 = arith.constant 0 : index
      %c0_46 = arith.constant 0 : index
      %95 = vector.load %arg18[%c1_44, %c0_45, %c0_46] : memref<2x8x128xf32, #tpu.memory_space<vmem>>, vector<1x8x128xf32>
      %96 = vector.shape_cast %95 : vector<1x8x128xf32> to vector<8x128xf32>
      %97 = vector.shape_cast %94 : vector<8x128xf32> to vector<1x8x128xf32>
      tpu.vector_store %arg18[%c1_44, %c0_45, %c0_46], %97 {strides = array<i32>} : memref<2x8x128xf32, #tpu.memory_space<vmem>>, vector<1x8x128xf32>,
      %98 = arith.truncf %94 : vector<8x128xf32> to vector<8x128xbf16>
      %c0_47 = arith.constant 0 : index
      %c0_48 = arith.constant 0 : index
      %99 = vector.load %arg11[%c0_47, %c0_48] : memref<128x64xbf16, #tpu.memory_space<vmem>>, vector<128x64xbf16>
      %cst_49 = arith.constant dense<0.000000e+00> : vector<8x64xf32>
      %100 = tpu.matmul %98, %99, %cst_49 {dimension_numbers = #tpu.dot_dimension_numbers<[1], [0], [0], [1], [0, 0, 1, 1], [], []>} : vector<8x128xbf16>, vector<128x64xbf16>, vector<8x64xf32> -> vector<8x64xf32>
      %c0_50 = arith.constant 0 : index
      %c0_51 = arith.constant 0 : index
      %101 = vector.load %arg12[%c0_50, %c0_51] : memref<1x64xf32, #tpu.memory_space<vmem>>, vector<1x64xf32>
      %102 = vector.broadcast %101 : vector<1x64xf32> to vector<8x64xf32>
      %103 = arith.addf %100, %102 : vector<8x64xf32>
      %104 = arith.truncf %103 : vector<8x64xf32> to vector<8x64xbf16>
      %c0_52 = arith.constant 0 : index
      %c0_53 = arith.constant 0 : index
      %105 = vector.load %arg13[%c0_52, %c0_53] : memref<64x128xbf16, #tpu.memory_space<vmem>>, vector<64x128xbf16>
      %cst_54 = arith.constant dense<0.000000e+00> : vector<8x128xf32>
      %106 = tpu.matmul %104, %105, %cst_54 {dimension_numbers = #tpu.dot_dimension_numbers<[1], [0], [0], [1], [0, 0, 1, 1], [], []>} : vector<8x64xbf16>, vector<64x128xbf16>, vector<8x128xf32> -> vector<8x128xf32>
      %c0_55 = arith.constant 0 : index
      %c0_56 = arith.constant 0 : index
      %107 = vector.load %arg14[%c0_55, %c0_56] : memref<1x128xf32, #tpu.memory_space<vmem>>, vector<1x128xf32>
      %108 = vector.broadcast %107 : vector<1x128xf32> to vector<8x128xf32>
      %109 = arith.addf %106, %108 : vector<8x128xf32>
      %c0_57 = arith.constant 0 : index
      %c0_58 = arith.constant 0 : index
      %110 = vector.load %arg19[%c0_57, %c0_58] : memref<8x128xf32, #tpu.memory_space<vmem>>, vector<8x128xf32>
      tpu.vector_store %arg19[%c0_57, %c0_58], %109 {strides = array<i32>} : memref<8x128xf32, #tpu.memory_space<vmem>>, vector<8x128xf32>,
    } else {
    }
    %c0 = arith.constant 0 : index
    %c0_1 = arith.constant 0 : index
    %3 = vector.load %arg19[%c0, %c0_1] : memref<8x128xf32, #tpu.memory_space<vmem>>, vector<8x128xf32>
    %4 = arith.truncf %3 : vector<8x128xf32> to vector<8x128xbf16>
    %c0_2 = arith.constant 0 : index
    %c0_3 = arith.constant 0 : index
    %5 = vector.load %arg15[%c0_2, %c0_3] : memref<128x512xbf16, #tpu.memory_space<vmem>>, vector<128x512xbf16>
    %cst = arith.constant dense<0.000000e+00> : vector<8x512xf32>
    %6 = tpu.matmul %4, %5, %cst {dimension_numbers = #tpu.dot_dimension_numbers<[1], [0], [0], [1], [0, 0, 1, 1], [], []>} : vector<8x128xbf16>, vector<128x512xbf16>, vector<8x512xf32> -> vector<8x512xf32>
    %c0_4 = arith.constant 0 : index
    %c0_5 = arith.constant 0 : index
    %7 = vector.load %arg16[%c0_4, %c0_5] : memref<1x512xf32, #tpu.memory_space<vmem>>, vector<1x512xf32>
    %8 = vector.broadcast %7 : vector<1x512xf32> to vector<8x512xf32>
    %9 = arith.addf %6, %8 : vector<8x512xf32>
    %c0_6 = arith.constant 0 : index
    %c0_7 = arith.constant 0 : index
    %10 = vector.load %arg17[%c0_6, %c0_7] : memref<8x512xf32, #tpu.memory_space<vmem>>, vector<8x512xf32>
    tpu.vector_store %arg17[%c0_6, %c0_7], %9 {strides = array<i32>} : memref<8x512xf32, #tpu.memory_space<vmem>>, vector<8x512xf32>,
    return
  }
  func.func @transform_0(%arg0: i32) -> (i32, i32) {
    %c0_i32 = arith.constant 0 : i32
    %c0_i32_0 = arith.constant 0 : i32
    %c0_i32_1 = arith.constant 0 : i32
    return %c0_i32, %c0_i32_0 : i32, i32
  }
  func.func @transform_1(%arg0: i32) -> (i32, i32, i32) {
    %c0_i32 = arith.constant 0 : i32
    %c0_i32_0 = arith.constant 0 : i32
    %c0_i32_1 = arith.constant 0 : i32
    %c0_i32_2 = arith.constant 0 : i32
    return %c0_i32, %c0_i32_0, %c0_i32_1 : i32, i32, i32
  }
  func.func @transform_2(%arg0: i32) -> (i32, i32) {
    %c0_i32 = arith.constant 0 : i32
    %c0_i32_0 = arith.constant 0 : i32
    %c0_i32_1 = arith.constant 0 : i32
    return %c0_i32, %c0_i32_0 : i32, i32
  }
  func.func @transform_3(%arg0: i32) -> (i32, i32) {
    %c0_i32 = arith.constant 0 : i32
    %c0_i32_0 = arith.constant 0 : i32
    %c0_i32_1 = arith.constant 0 : i32
    return %c0_i32, %c0_i32_0 : i32, i32
  }
  func.func @transform_4(%arg0: i32) -> (i32, i32) {
    %c0_i32 = arith.constant 0 : i32
    %c0_i32_0 = arith.constant 0 : i32
    %c0_i32_1 = arith.constant 0 : i32
    return %c0_i32, %c0_i32_0 : i32, i32
  }
  func.func @transform_5(%arg0: i32) -> (i32, i32) {
    %c0_i32 = arith.constant 0 : i32
    %c0_i32_0 = arith.constant 0 : i32
    %c0_i32_1 = arith.constant 0 : i32
    return %c0_i32, %c0_i32_0 : i32, i32
  }
  func.func @transform_6(%arg0: i32) -> (i32, i32) {
    %c0_i32 = arith.constant 0 : i32
    %c0_i32_0 = arith.constant 0 : i32
    %c0_i32_1 = arith.constant 0 : i32
    return %c0_i32, %c0_i32_0 : i32, i32
  }
  func.func @transform_7(%arg0: i32) -> (i32, i32) {
    %c0_i32 = arith.constant 0 : i32
    %c0_i32_0 = arith.constant 0 : i32
    %c0_i32_1 = arith.constant 0 : i32
    return %c0_i32, %c0_i32_0 : i32, i32
  }
  func.func @transform_8(%arg0: i32) -> (i32, i32) {
    %c0_i32 = arith.constant 0 : i32
    %c0_i32_0 = arith.constant 0 : i32
    %c0_i32_1 = arith.constant 0 : i32
    return %c0_i32, %c0_i32_0 : i32, i32
  }
  func.func @transform_9(%arg0: i32) -> (i32, i32) {
    %c0_i32 = arith.constant 0 : i32
    %c0_i32_0 = arith.constant 0 : i32
    %c0_i32_1 = arith.constant 0 : i32
    return %c0_i32, %c0_i32_0 : i32, i32
  }
  func.func @transform_10(%arg0: i32) -> (i32, i32) {
    %c0_i32 = arith.constant 0 : i32
    %c0_i32_0 = arith.constant 0 : i32
    %c0_i32_1 = arith.constant 0 : i32
    return %c0_i32, %c0_i32_0 : i32, i32
  }
  func.func @transform_11(%arg0: i32) -> (i32, i32) {
    %c0_i32 = arith.constant 0 : i32
    %c0_i32_0 = arith.constant 0 : i32
    %c0_i32_1 = arith.constant 0 : i32
    return %c0_i32, %c0_i32_0 : i32, i32
  }
  func.func @transform_12(%arg0: i32) -> (i32, i32) {
    %c0_i32 = arith.constant 0 : i32
    %c0_i32_0 = arith.constant 0 : i32
    %c0_i32_1 = arith.constant 0 : i32
    return %c0_i32, %c0_i32_0 : i32, i32
  }
  func.func @transform_13(%arg0: i32) -> (i32, i32) {
    %c0_i32 = arith.constant 0 : i32
    %c0_i32_0 = arith.constant 0 : i32
    %c0_i32_1 = arith.constant 0 : i32
    return %c0_i32, %c0_i32_0 : i32, i32
  }
  func.func @transform_14(%arg0: i32) -> (i32, i32) {
    %c0_i32 = arith.constant 0 : i32
    %c0_i32_0 = arith.constant 0 : i32
    return %c0_i32, %arg0 : i32, i32
  }
  func.func @transform_15(%arg0: i32) -> (i32, i32) {
    %c0_i32 = arith.constant 0 : i32
    %c0_i32_0 = arith.constant 0 : i32
    return %c0_i32, %arg0 : i32, i32
  }
  func.func @transform_16(%arg0: i32) -> (i32, i32) {
    %c0_i32 = arith.constant 0 : i32
    %c0_i32_0 = arith.constant 0 : i32
    return %c0_i32, %arg0 : i32, i32
  }
  func.func @transform_17(%arg0: i32) -> (i32, i32, i32) {
    %c0_i32 = arith.constant 0 : i32
    %c0_i32_0 = arith.constant 0 : i32
    %c0_i32_1 = arith.constant 0 : i32
    %c0_i32_2 = arith.constant 0 : i32
    return %c0_i32, %c0_i32_0, %c0_i32_1 : i32, i32, i32
  }
}

</mosaic_0001>

<llo_original>
// kernel: decoder_forward.1
$region0: #{decoder_forward.1}
  #allocation0 [shape = 'u32[]', space=smem, size = 0x4, offset = 0x4, fixed_abs, tag = 'smem constant byte address 0x4 - core index']
  #allocation1 [shape = 'u32[72,128]{1,0:T(1,128)}', space=vmem, size = 0x9000, scoped, tag = 'internal scratch']
  #allocation2 [shape = 'f32[8,128]{1,0:T(8,128)}', space=vmem, size = 0x1000, scoped, tag = 'scratch operand']
  %s0 = inlined_call_operand.vmem [shape: f32[8,32], index: 0, kind: input, shape index: {}]
  %s1 = inlined_call_operand.vmem [shape: f32[2,8,128], index: 1, kind: input, shape index: {}, may-alias: {1,17}]
  %s2 = inlined_call_operand.vmem [shape: bf16[32,384], index: 2, kind: input, shape index: {}]
  %s3 = inlined_call_operand.vmem [shape: bf16[128,384], index: 3, kind: input, shape index: {}]
  %s4 = inlined_call_operand.vmem [shape: f32[1,384], index: 4, kind: input, shape index: {}]
  %s5 = inlined_call_operand.vmem [shape: f32[1,128], index: 5, kind: input, shape index: {}]
  %s6 = inlined_call_operand.vmem [shape: bf16[128,384], index: 6, kind: input, shape index: {}]
  %s7 = inlined_call_operand.vmem [shape: bf16[128,384], index: 7, kind: input, shape index: {}]
  %s8 = inlined_call_operand.vmem [shape: f32[1,384], index: 8, kind: input, shape index: {}]
  %s9 = inlined_call_operand.vmem [shape: f32[1,128], index: 9, kind: input, shape index: {}]
  %s10 = inlined_call_operand.vmem [shape: bf16[128,64], index: 10, kind: input, shape index: {}]
  %s11 = inlined_call_operand.vmem [shape: f32[1,64], index: 11, kind: input, shape index: {}]
  %s12 = inlined_call_operand.vmem [shape: bf16[64,128], index: 12, kind: input, shape index: {}]
  %s13 = inlined_call_operand.vmem [shape: f32[1,128], index: 13, kind: input, shape index: {}]
  %s14 = inlined_call_operand.vmem [shape: bf16[128,2048], index: 14, kind: input, shape index: {}]
  %s15 = inlined_call_operand.vmem [shape: f32[1,2048], index: 15, kind: input, shape index: {}]
  %s16 = inlined_call_operand.vmem [shape: f32[8,2048], index: 16, kind: output, shape index: {0}]
  %s17 = inlined_call_operand.vmem [shape: f32[2,8,128], index: 17, kind: output, shape index: {1}, may-alias: {1,17}]
  %18 = xla_tuple %s16, %s17
  %s19 = sld [smem:[#allocation0]]
  $region132: #{decoder_forward.1} parent=0
    _
  %s21 = ssub.s32 1, %s19
  %s22 = scalar_select 0, %s21, %s19
  $region1: #{decoder_forward.1} parent=0
    #allocation3 [shape = 'u8[262144]{0}', space=vmem, size = 0x40000, scoped, tag = 'input window, operand 14']
    loop: start=0, step=1, limit=6
    $region2: #{decoder_forward.1} parent=1 // loop_pre_header
      _
    $region3: #{decoder_forward.1} parent=1 // loop_header
      %s24 = sphi 0, %s28
      %p25 = scmp.ge.s32.totalorder %s24, 6
      %s32 = sphi 0, %s32
      %s34 = sphi 0, %s32
      %s35 = sphi 0, %s34
      %s49 = sphi 0, %s35
      %s53 = sphi 0, %s53
      %s55 = sphi 0, %s53
      %s56 = sphi 0, %s55
      %s70 = sphi 0, %s56
      %s74 = sphi 0, %s74
      %s76 = sphi 0, %s74
      %s77 = sphi 0, %s76
      %s91 = sphi 0, %s77
      %s95 = sphi 0, %s95
      %s97 = sphi 0, %s95
      %s98 = sphi 0, %s97
      %s112 = sphi 0, %s98
      %s116 = sphi 0, %s116
      %s118 = sphi 0, %s116
      %s119 = sphi 0, %s118
      %s133 = sphi 0, %s119
      %s137 = sphi 0, %s137
      %s139 = sphi 0, %s137
      %s140 = sphi 0, %s139
      %s154 = sphi 0, %s140
      %s158 = sphi 0, %s158
      %s160 = sphi 0, %s158
      %s161 = sphi 0, %s160
      %s175 = sphi 0, %s161
      %s179 = sphi 0, %s179
      %s181 = sphi 0, %s179
      %s182 = sphi 0, %s181
      %s196 = sphi 0, %s182
      %s200 = sphi 0, %s200
      %s202 = sphi 0, %s200
      %s203 = sphi 0, %s202
      %s217 = sphi 0, %s203
      %s221 = sphi 0, %s221
      %s223 = sphi 0, %s221
      %s224 = sphi 0, %s223
      %s238 = sphi 0, %s224
      %s242 = sphi 0, %s242
      %s244 = sphi 0, %s242
      %s245 = sphi 0, %s244
      %s259 = sphi 0, %s245
      %s263 = sphi 0, %s263
      %s265 = sphi 0, %s263
      %s266 = sphi 0, %s265
      %s280 = sphi 0, %s266
      %s284 = sphi 0, %s284
      %s286 = sphi 0, %s284
      %s287 = sphi 0, %s286
      %s301 = sphi 0, %s287
      %s305 = sphi 0, %s305
      %s307 = sphi 0, %s305
      %s308 = sphi 0, %s307
      %s322 = sphi 0, %s308
      %s328 = sphi 0, %s330
      %s331 = sphi 0, %s328
      %s332 = sphi 0, %s331
      %s348 = sphi 0, %s332
      %s354 = sphi 0, %s356
      %s357 = sphi 0, %s354
      %s358 = sphi 0, %s357
      %s374 = sphi 0, %s358
      %s380 = sphi 0, %s382
      %s383 = sphi 0, %s380
      %s384 = sphi 0, %s383
      %s400 = sphi 0, %s384
      %s404 = sphi 0, %s404
      %s406 = sphi 0, %s404
      %s407 = sphi 0, %s406
      %s421 = sphi 0, %s407
    $region4: #{decoder_forward.1} parent=1 // loop_header_branch
      %27 = sbr.rel (%p25) target = $region8
    $region5: #{decoder_forward.1} parent=1 // loop_body
      %s29 = ssub.s32 %s24, 1
      %s30 = ssub.s32 %s24, 2
      %s31 = sadd.s32 %s24, 1
      %s33 = sadd.s32 %s32, 1
      %p36 = scmp.eq.s32.totalorder %s24, 3
      %p37 = scmp.ne.s32.totalorder %s32, %s34
      %p38 = scmp.eq.s32.totalorder %s24, 0
      %p39 = por %p37, %p38
      %p40 = scmp.ne.s32.totalorder %s32, %s34
      %p41 = scmp.eq.s32.totalorder %s29, 3
      %p42 = por %p40, %p41
      %p43 = scmp.ne.s32.totalorder %s34, %s35
      %p44 = scmp.eq.s32.totalorder %s29, 0
      %p45 = por %p43, %p44
      %p46 = scmp.ne.s32.totalorder %s34, %s35
      %p47 = scmp.eq.s32.totalorder %s30, 3
      %p48 = por %p46, %p47
      %p50 = scmp.ne.s32.totalorder %s35, %s49
      %p51 = scmp.eq.s32.totalorder %s30, 0
      %p52 = por %p50, %p51
      %s54 = sadd.s32 %s53, 1
      %p57 = scmp.eq.s32.totalorder %s24, 3
      %p58 = scmp.ne.s32.totalorder %s53, %s55
      %p59 = scmp.eq.s32.totalorder %s24, 0
      %p60 = por %p58, %p59
      %p61 = scmp.ne.s32.totalorder %s53, %s55
      %p62 = scmp.eq.s32.totalorder %s29, 3
      %p63 = por %p61, %p62
      %p64 = scmp.ne.s32.totalorder %s55, %s56
      %p65 = scmp.eq.s32.totalorder %s29, 0
      %p66 = por %p64, %p65
      %p67 = scmp.ne.s32.totalorder %s55, %s56
      %p68 = scmp.eq.s32.totalorder %s30, 3
      %p69 = por %p67, %p68
      %p71 = scmp.ne.s32.totalorder %s56, %s70
      %p72 = scmp.eq.s32.totalorder %s30, 0
      %p73 = por %p71, %p72
      %s75 = sadd.s32 %s74, 1
      %p78 = scmp.eq.s32.totalorder %s24, 3
      %p79 = scmp.ne.s32.totalorder %s74, %s76
      %p80 = scmp.eq.s32.totalorder %s24, 0
      %p81 = por %p79, %p80
      %p82 = scmp.ne.s32.totalorder %s74, %s76
      %p83 = scmp.eq.s32.totalorder %s29, 3
      %p84 = por %p82, %p83
      %p85 = scmp.ne.s32.totalorder %s76, %s77
      %p86 = scmp.eq.s32.totalorder %s29, 0
      %p87 = por %p85, %p86
      %p88 = scmp.ne.s32.totalorder %s76, %s77
      %p89 = scmp.eq.s32.totalorder %s30, 3
      %p90 = por %p88, %p89
      %p92 = scmp.ne.s32.totalorder %s77, %s91
      %p93 = scmp.eq.s32.totalorder %s30, 0
      %p94 = por %p92, %p93
      %s96 = sadd.s32 %s95, 1
      %p99 = scmp.eq.s32.totalorder %s24, 3
      %p100 = scmp.ne.s32.totalorder %s95, %s97
      %p101 = scmp.eq.s32.totalorder %s24, 0
      %p102 = por %p100, %p101
      %p103 = scmp.ne.s32.totalorder %s95, %s97
      %p104 = scmp.eq.s32.totalorder %s29, 3
      %p105 = por %p103, %p104
      %p106 = scmp.ne.s32.totalorder %s97, %s98
      %p107 = scmp.eq.s32.totalorder %s29, 0
      %p108 = por %p106, %p107
      %p109 = scmp.ne.s32.totalorder %s97, %s98
      %p110 = scmp.eq.s32.totalorder %s30, 3
      %p111 = por %p109, %p110
      %p113 = scmp.ne.s32.totalorder %s98, %s112
      %p114 = scmp.eq.s32.totalorder %s30, 0
      %p115 = por %p113, %p114
      %s117 = sadd.s32 %s116, 1
      %p120 = scmp.eq.s32.totalorder %s24, 3
      %p121 = scmp.ne.s32.totalorder %s116, %s118
      %p122 = scmp.eq.s32.totalorder %s24, 0
      %p123 = por %p121, %p122
      %p124 = scmp.ne.s32.totalorder %s116, %s118
      %p125 = scmp.eq.s32.totalorder %s29, 3
      %p126 = por %p124, %p125
      %p127 = scmp.ne.s32.totalorder %s118, %s119
      %p128 = scmp.eq.s32.totalorder %s29, 0
      %p129 = por %p127, %p128
      %p130 = scmp.ne.s32.totalorder %s118, %s119
      %p131 = scmp.eq.s32.totalorder %s30, 3
      %p132 = por %p130, %p131
      %p134 = scmp.ne.s32.totalorder %s119, %s133
      %p135 = scmp.eq.s32.totalorder %s30, 0
      %p136 = por %p134, %p135
      %s138 = sadd.s32 %s137, 1
      %p141 = scmp.eq.s32.totalorder %s24, 3
      %p142 = scmp.ne.s32.totalorder %s137, %s139
      %p143 = scmp.eq.s32.totalorder %s24, 0
      %p144 = por %p142, %p143
      %p145 = scmp.ne.s32.totalorder %s137, %s139
      %p146 = scmp.eq.s32.totalorder %s29, 3
      %p147 = por %p145, %p146
      %p148 = scmp.ne.s32.totalorder %s139, %s140
      %p149 = scmp.eq.s32.totalorder %s29, 0
      %p150 = por %p148, %p149
      %p151 = scmp.ne.s32.totalorder %s139, %s140
      %p152 = scmp.eq.s32.totalorder %s30, 3
      %p153 = por %p151, %p152
      %p155 = scmp.ne.s32.totalorder %s140, %s154
      %p156 = scmp.eq.s32.totalorder %s30, 0
      %p157 = por %p155, %p156
      %s159 = sadd.s32 %s158, 1
      %p162 = scmp.eq.s32.totalorder %s24, 3
      %p163 = scmp.ne.s32.totalorder %s158, %s160
      %p164 = scmp.eq.s32.totalorder %s24, 0
      %p165 = por %p163, %p164
      %p166 = scmp.ne.s32.totalorder %s158, %s160
      %p167 = scmp.eq.s32.totalorder %s29, 3
      %p168 = por %p166, %p167
      %p169 = scmp.ne.s32.totalorder %s160, %s161
      %p170 = scmp.eq.s32.totalorder %s29, 0
      %p171 = por %p169, %p170
      %p172 = scmp.ne.s32.totalorder %s160, %s161
      %p173 = scmp.eq.s32.totalorder %s30, 3
      %p174 = por %p172, %p173
      %p176 = scmp.ne.s32.totalorder %s161, %s175
      %p177 = scmp.eq.s32.totalorder %s30, 0
      %p178 = por %p176, %p177
      %s180 = sadd.s32 %s179, 1
      %p183 = scmp.eq.s32.totalorder %s24, 3
      %p184 = scmp.ne.s32.totalorder %s179, %s181
      %p185 = scmp.eq.s32.totalorder %s24, 0
      %p186 = por %p184, %p185
      %p187 = scmp.ne.s32.totalorder %s179, %s181
      %p188 = scmp.eq.s32.totalorder %s29, 3
      %p189 = por %p187, %p188
      %p190 = scmp.ne.s32.totalorder %s181, %s182
      %p191 = scmp.eq.s32.totalorder %s29, 0
      %p192 = por %p190, %p191
      %p193 = scmp.ne.s32.totalorder %s181, %s182
      %p194 = scmp.eq.s32.totalorder %s30, 3
      %p195 = por %p193, %p194
      %p197 = scmp.ne.s32.totalorder %s182, %s196
      %p198 = scmp.eq.s32.totalorder %s30, 0
      %p199 = por %p197, %p198
      %s201 = sadd.s32 %s200, 1
      %p204 = scmp.eq.s32.totalorder %s24, 3
      %p205 = scmp.ne.s32.totalorder %s200, %s202
      %p206 = scmp.eq.s32.totalorder %s24, 0
      %p207 = por %p205, %p206
      %p208 = scmp.ne.s32.totalorder %s200, %s202
      %p209 = scmp.eq.s32.totalorder %s29, 3
      %p210 = por %p208, %p209
      %p211 = scmp.ne.s32.totalorder %s202, %s203
      %p212 = scmp.eq.s32.totalorder %s29, 0
      %p213 = por %p211, %p212
      %p214 = scmp.ne.s32.totalorder %s202, %s203
      %p215 = scmp.eq.s32.totalorder %s30, 3
      %p216 = por %p214, %p215
      %p218 = scmp.ne.s32.totalorder %s203, %s217
      %p219 = scmp.eq.s32.totalorder %s30, 0
      %p220 = por %p218, %p219
      %s222 = sadd.s32 %s221, 1
      %p225 = scmp.eq.s32.totalorder %s24, 3
      %p226 = scmp.ne.s32.totalorder %s221, %s223
      %p227 = scmp.eq.s32.totalorder %s24, 0
      %p228 = por %p226, %p227
      %p229 = scmp.ne.s32.totalorder %s221, %s223
      %p230 = scmp.eq.s32.totalorder %s29, 3
      %p231 = por %p229, %p230
      %p232 = scmp.ne.s32.totalorder %s223, %s224
      %p233 = scmp.eq.s32.totalorder %s29, 0
      %p234 = por %p232, %p233
      %p235 = scmp.ne.s32.totalorder %s223, %s224
      %p236 = scmp.eq.s32.totalorder %s30, 3
      %p237 = por %p235, %p236
      %p239 = scmp.ne.s32.totalorder %s224, %s238
      %p240 = scmp.eq.s32.totalorder %s30, 0
      %p241 = por %p239, %p240
      %s243 = sadd.s32 %s242, 1
      %p246 = scmp.eq.s32.totalorder %s24, 3
      %p247 = scmp.ne.s32.totalorder %s242, %s244
      %p248 = scmp.eq.s32.totalorder %s24, 0
      %p249 = por %p247, %p248
      %p250 = scmp.ne.s32.totalorder %s242, %s244
      %p251 = scmp.eq.s32.totalorder %s29, 3
      %p252 = por %p250, %p251
      %p253 = scmp.ne.s32.totalorder %s244, %s245
      %p254 = scmp.eq.s32.totalorder %s29, 0
      %p255 = por %p253, %p254
      %p256 = scmp.ne.s32.totalorder %s244, %s245
      %p257 = scmp.eq.s32.totalorder %s30, 3
      %p258 = por %p256, %p257
      %p260 = scmp.ne.s32.totalorder %s245, %s259
      %p261 = scmp.eq.s32.totalorder %s30, 0
      %p262 = por %p260, %p261
      %s264 = sadd.s32 %s263, 1
      %p267 = scmp.eq.s32.totalorder %s24, 3
      %p268 = scmp.ne.s32.totalorder %s263, %s265
      %p269 = scmp.eq.s32.totalorder %s24, 0
      %p270 = por %p268, %p269
      %p271 = scmp.ne.s32.totalorder %s263, %s265
      %p272 = scmp.eq.s32.totalorder %s29, 3
      %p273 = por %p271, %p272
      %p274 = scmp.ne.s32.totalorder %s265, %s266
      %p275 = scmp.eq.s32.totalorder %s29, 0
      %p276 = por %p274, %p275
      %p277 = scmp.ne.s32.totalorder %s265, %s266
      %p278 = scmp.eq.s32.totalorder %s30, 3
      %p279 = por %p277, %p278
      %p281 = scmp.ne.s32.totalorder %s266, %s280
      %p282 = scmp.eq.s32.totalorder %s30, 0
      %p283 = por %p281, %p282
      %s285 = sadd.s32 %s284, 1
      %p288 = scmp.eq.s32.totalorder %s24, 3
      %p289 = scmp.ne.s32.totalorder %s284, %s286
      %p290 = scmp.eq.s32.totalorder %s24, 0
      %p291 = por %p289, %p290
      %p292 = scmp.ne.s32.totalorder %s284, %s286
      %p293 = scmp.eq.s32.totalorder %s29, 3
      %p294 = por %p292, %p293
      %p295 = scmp.ne.s32.totalorder %s286, %s287
      %p296 = scmp.eq.s32.totalorder %s29, 0
      %p297 = por %p295, %p296
      %p298 = scmp.ne.s32.totalorder %s286, %s287
      %p299 = scmp.eq.s32.totalorder %s30, 3
      %p300 = por %p298, %p299
      %p302 = scmp.ne.s32.totalorder %s287, %s301
      %p303 = scmp.eq.s32.totalorder %s30, 0
      %p304 = por %p302, %p303
      %s306 = sadd.s32 %s305, 1
      %p309 = scmp.eq.s32.totalorder %s24, 3
      %p310 = scmp.ne.s32.totalorder %s305, %s307
      %p311 = scmp.eq.s32.totalorder %s24, 0
      %p312 = por %p310, %p311
      %p313 = scmp.ne.s32.totalorder %s305, %s307
      %p314 = scmp.eq.s32.totalorder %s29, 3
      %p315 = por %p313, %p314
      %p316 = scmp.ne.s32.totalorder %s307, %s308
      %p317 = scmp.eq.s32.totalorder %s29, 0
      %p318 = por %p316, %p317
      %p319 = scmp.ne.s32.totalorder %s307, %s308
      %p320 = scmp.eq.s32.totalorder %s30, 3
      %p321 = por %p319, %p320
      %p323 = scmp.ne.s32.totalorder %s308, %s322
      %p324 = scmp.eq.s32.totalorder %s30, 0
      %p325 = por %p323, %p324
      %s326 = ssub.s32 %s24, %s31
      %p327 = scmp.eq.s32.totalorder %s326, 0
      %s329 = sadd.s32 %s328, 1
      %s330 = scalar_select %p327, %s328, %s329
      %p333 = pneg %p327
      %p334 = scmp.eq.s32.totalorder %s24, 3
      %p335 = por %p333, %p334
      %p336 = scmp.ne.s32.totalorder %s328, %s331
      %p337 = scmp.eq.s32.totalorder %s24, 0
      %p338 = por %p336, %p337
      %p339 = scmp.ne.s32.totalorder %s328, %s331
      %p340 = scmp.eq.s32.totalorder %s29, 3
      %p341 = por %p339, %p340
      %p342 = scmp.ne.s32.totalorder %s331, %s332
      %p343 = scmp.eq.s32.totalorder %s29, 0
      %p344 = por %p342, %p343
      %p345 = scmp.ne.s32.totalorder %s331, %s332
      %p346 = scmp.eq.s32.totalorder %s30, 3
      %p347 = por %p345, %p346
      %p349 = scmp.ne.s32.totalorder %s332, %s348
      %p350 = scmp.eq.s32.totalorder %s30, 0
      %p351 = por %p349, %p350
      %s352 = ssub.s32 %s24, %s31
      %p353 = scmp.eq.s32.totalorder %s352, 0
      %s355 = sadd.s32 %s354, 1
      %s356 = scalar_select %p353, %s354, %s355
      %p359 = pneg %p353
      %p360 = scmp.eq.s32.totalorder %s24, 3
      %p361 = por %p359, %p360
      %p362 = scmp.ne.s32.totalorder %s354, %s357
      %p363 = scmp.eq.s32.totalorder %s24, 0
      %p364 = por %p362, %p363
      %p365 = scmp.ne.s32.totalorder %s354, %s357
      %p366 = scmp.eq.s32.totalorder %s29, 3
      %p367 = por %p365, %p366
      %p368 = scmp.ne.s32.totalorder %s357, %s358
      %p369 = scmp.eq.s32.totalorder %s29, 0
      %p370 = por %p368, %p369
      %p371 = scmp.ne.s32.totalorder %s357, %s358
      %p372 = scmp.eq.s32.totalorder %s30, 3
      %p373 = por %p371, %p372
      %p375 = scmp.ne.s32.totalorder %s358, %s374
      %p376 = scmp.eq.s32.totalorder %s30, 0
      %p377 = por %p375, %p376
      %s378 = ssub.s32 %s24, %s31
      %p379 = scmp.eq.s32.totalorder %s378, 0
      %s381 = sadd.s32 %s380, 1
      %s382 = scalar_select %p379, %s380, %s381
      %p385 = pneg %p379
      %p386 = scmp.eq.s32.totalorder %s24, 3
      %p387 = por %p385, %p386
      %p388 = scmp.ne.s32.totalorder %s380, %s383
      %p389 = scmp.eq.s32.totalorder %s24, 0
      %p390 = por %p388, %p389
      %p391 = scmp.ne.s32.totalorder %s380, %s383
      %p392 = scmp.eq.s32.totalorder %s29, 3
      %p393 = por %p391, %p392
      %p394 = scmp.ne.s32.totalorder %s383, %s384
      %p395 = scmp.eq.s32.totalorder %s29, 0
      %p396 = por %p394, %p395
      %p397 = scmp.ne.s32.totalorder %s383, %s384
      %p398 = scmp.eq.s32.totalorder %s30, 3
      %p399 = por %p397, %p398
      %p401 = scmp.ne.s32.totalorder %s384, %s400
      %p402 = scmp.eq.s32.totalorder %s30, 0
      %p403 = por %p401, %p402
      %s405 = sadd.s32 %s404, 1
      %p408 = scmp.eq.s32.totalorder %s24, 3
      %p409 = scmp.ne.s32.totalorder %s404, %s406
      %p410 = scmp.eq.s32.totalorder %s24, 0
      %p411 = por %p409, %p410
      %p412 = scmp.ne.s32.totalorder %s404, %s406
      %p413 = scmp.eq.s32.totalorder %s29, 3
      %p414 = por %p412, %p413
      %p415 = scmp.ne.s32.totalorder %s406, %s407
      %p416 = scmp.eq.s32.totalorder %s29, 0
      %p417 = por %p415, %p416
      %p418 = scmp.ne.s32.totalorder %s406, %s407
      %p419 = scmp.eq.s32.totalorder %s30, 3
      %p420 = por %p418, %p419
      %p422 = scmp.ne.s32.totalorder %s407, %s421
      %p423 = scmp.eq.s32.totalorder %s30, 0
      %p424 = por %p422, %p423
      %p425 = scmp.le.s32.totalorder 1, %s24
      %p426 = scmp.lt.s32.totalorder %s24, 5
      %p427 = pnand %p425, %p426
      %p428 = pneg %p427
      // Predicated region
      $region9: #{decoder_forward.1} parent=5 // pred_check
        _
      $region10: #{decoder_forward.1} parent=5 // pred_check_branch
        %430 = sbr.rel (%p427) target = $region12
      $region11: #{decoder_forward.1} parent=5 // pred_region
        %s431 = ssub.s32 %s24, 1
        // Predicated region
        $region13: #{decoder_forward.1} parent=11 // pred_check
          %p432 = pneg %p45
        $region14: #{decoder_forward.1} parent=11 // pred_check_branch
          %434 = sbr.rel (%p432) target = $region16
        $region15: #{decoder_forward.1} parent=11 // pred_region
          _
        $region16: #{decoder_forward.1} parent=11 // pred_fallthru
          _
        // Predicated region
        $region17: #{decoder_forward.1} parent=11 // pred_check
          %p435 = pneg %p66
        $region18: #{decoder_forward.1} parent=11 // pred_check_branch
          %437 = sbr.rel (%p435) target = $region20
        $region19: #{decoder_forward.1} parent=11 // pred_region
          _
        $region20: #{decoder_forward.1} parent=11 // pred_fallthru
          _
        // Predicated region
        $region21: #{decoder_forward.1} parent=11 // pred_check
          %p438 = pneg %p87
        $region22: #{decoder_forward.1} parent=11 // pred_check_branch
          %440 = sbr.rel (%p438) target = $region24
        $region23: #{decoder_forward.1} parent=11 // pred_region
          _
        $region24: #{decoder_forward.1} parent=11 // pred_fallthru
          _
        // Predicated region
        $region25: #{decoder_forward.1} parent=11 // pred_check
          %p441 = pneg %p108
        $region26: #{decoder_forward.1} parent=11 // pred_check_branch
          %443 = sbr.rel (%p441) target = $region28
        $region27: #{decoder_forward.1} parent=11 // pred_region
          _
        $region28: #{decoder_forward.1} parent=11 // pred_fallthru
          _
        // Predicated region
        $region29: #{decoder_forward.1} parent=11 // pred_check
          %p444 = pneg %p129
        $region30: #{decoder_forward.1} parent=11 // pred_check_branch
          %446 = sbr.rel (%p444) target = $region32
        $region31: #{decoder_forward.1} parent=11 // pred_region
          _
        $region32: #{decoder_forward.1} parent=11 // pred_fallthru
          _
        // Predicated region
        $region33: #{decoder_forward.1} parent=11 // pred_check
          %p447 = pneg %p150
        $region34: #{decoder_forward.1} parent=11 // pred_check_branch
          %449 = sbr.rel (%p447) target = $region36
        $region35: #{decoder_forward.1} parent=11 // pred_region
          _
        $region36: #{decoder_forward.1} parent=11 // pred_fallthru
          _
        // Predicated region
        $region37: #{decoder_forward.1} parent=11 // pred_check
          %p450 = pneg %p171
        $region38: #{decoder_forward.1} parent=11 // pred_check_branch
          %452 = sbr.rel (%p450) target = $region40
        $region39: #{decoder_forward.1} parent=11 // pred_region
          _
        $region40: #{decoder_forward.1} parent=11 // pred_fallthru
          _
        // Predicated region
        $region41: #{decoder_forward.1} parent=11 // pred_check
          %p453 = pneg %p192
        $region42: #{decoder_forward.1} parent=11 // pred_check_branch
          %455 = sbr.rel (%p453) target = $region44
        $region43: #{decoder_forward.1} parent=11 // pred_region
          _
        $region44: #{decoder_forward.1} parent=11 // pred_fallthru
          _
        // Predicated region
        $region45: #{decoder_forward.1} parent=11 // pred_check
          %p456 = pneg %p213
        $region46: #{decoder_forward.1} parent=11 // pred_check_branch
          %458 = sbr.rel (%p456) target = $region48
        $region47: #{decoder_forward.1} parent=11 // pred_region
          _
        $region48: #{decoder_forward.1} parent=11 // pred_fallthru
          _
        // Predicated region
        $region49: #{decoder_forward.1} parent=11 // pred_check
          %p459 = pneg %p234
        $region50: #{decoder_forward.1} parent=11 // pred_check_branch
          %461 = sbr.rel (%p459) target = $region52
        $region51: #{decoder_forward.1} parent=11 // pred_region
          _
        $region52: #{decoder_forward.1} parent=11 // pred_fallthru
          _
        // Predicated region
        $region53: #{decoder_forward.1} parent=11 // pred_check
          %p462 = pneg %p255
        $region54: #{decoder_forward.1} parent=11 // pred_check_branch
          %464 = sbr.rel (%p462) target = $region56
        $region55: #{decoder_forward.1} parent=11 // pred_region
          _
        $region56: #{decoder_forward.1} parent=11 // pred_fallthru
          _
        // Predicated region
        $region57: #{decoder_forward.1} parent=11 // pred_check
          %p465 = pneg %p276
        $region58: #{decoder_forward.1} parent=11 // pred_check_branch
          %467 = sbr.rel (%p465) target = $region60
        $region59: #{decoder_forward.1} parent=11 // pred_region
          _
        $region60: #{decoder_forward.1} parent=11 // pred_fallthru
          _
        // Predicated region
        $region61: #{decoder_forward.1} parent=11 // pred_check
          %p468 = pneg %p297
        $region62: #{decoder_forward.1} parent=11 // pred_check_branch
          %470 = sbr.rel (%p468) target = $region64
        $region63: #{decoder_forward.1} parent=11 // pred_region
          _
        $region64: #{decoder_forward.1} parent=11 // pred_fallthru
          _
        // Predicated region
        $region65: #{decoder_forward.1} parent=11 // pred_check
          %p471 = pneg %p318
        $region66: #{decoder_forward.1} parent=11 // pred_check_branch
          %473 = sbr.rel (%p471) target = $region68
        $region67: #{decoder_forward.1} parent=11 // pred_region
          _
        $region68: #{decoder_forward.1} parent=11 // pred_fallthru
          _
      $region12: #{decoder_forward.1} parent=5 // pred_fallthru
        _
      %p474 = scmp.lt.s32.totalorder %s24, 4
      // Predicated region
      $region69: #{decoder_forward.1} parent=5 // pred_check
        %p475 = pneg %p474
      $region70: #{decoder_forward.1} parent=5 // pred_check_branch
        %477 = sbr.rel (%p475) target = $region72
      $region71: #{decoder_forward.1} parent=5 // pred_region
        // Predicated region
        $region73: #{decoder_forward.1} parent=71 // pred_check
          %p478 = pneg %p338
        $region74: #{decoder_forward.1} parent=71 // pred_check_branch
          %480 = sbr.rel (%p478) target = $region76
        $region75: #{decoder_forward.1} parent=71 // pred_region
          %s481 = sand.u32 %s328, 1
          %s482 = sand.u32 %s328, 1
          %s483 = smul.addr %s482, 256
          %s484 = scalar_lea.vmem [#allocation3], %s483
          %s485 = smul.u32 4, %s24
          %s486 = smul.addr %s485, 4
          %s487 = scalar_lea.vmem %s14, %s486
          // Predicated region
          $region77: #{decoder_forward.1} parent=75 // pred_check
            _
          $region78: #{decoder_forward.1} parent=75 // pred_check_branch
            %489 = sbr.rel (0) target = $region80
          $region79: #{decoder_forward.1} parent=75 // pred_region
            // Predicated region
            $region81: #{decoder_forward.1} parent=79 // pred_check
              _
            $region82: #{decoder_forward.1} parent=79 // pred_check_branch
              %491 = sbr.rel (0) target = $region84
            $region83: #{decoder_forward.1} parent=79 // pred_region
              loop: start=0, step=1, limit=1
              $region85: #{decoder_forward.1} parent=83 // loop_pre_header
                _
              $region86: #{decoder_forward.1} parent=83 // loop_header
                %s493 = sphi 0, %s497
                %p494 = scmp.ge.s32.totalorder %s493, 1
                %s498 = sphi %s487, %s487
                %s499 = sphi %s484, %s484
              $region87: #{decoder_forward.1} parent=83 // loop_header_branch
                %496 = sbr.rel (%p494) target = $region91
              $region88: #{decoder_forward.1} parent=83 // loop_body
                %v500 = vld [vmem:[%s498] sm:$0xff]
                %501 = vst [vmem:[%s499] sm:$0xff] %v500
                %v502 = vld [vmem:[%s498 + $0x8] sm:$0xff]
                %503 = vst [vmem:[%s499 + $0x8] sm:$0xff] %v502
                %v504 = vld [vmem:[%s498 + $0x40] sm:$0xff]
                %505 = vst [vmem:[%s499 + $0x10] sm:$0xff] %v504
                %v506 = vld [vmem:[%s498 + $0x48] sm:$0xff]
                %507 = vst [vmem:[%s499 + $0x18] sm:$0xff] %v506
                %v508 = vld [vmem:[%s498 + $0x80] sm:$0xff]
                %509 = vst [vmem:[%s499 + $0x20] sm:$0xff] %v508
                %v510 = vld [vmem:[%s498 + $0x88] sm:$0xff]
                %511 = vst [vmem:[%s499 + $0x28] sm:$0xff] %v510
                %v512 = vld [vmem:[%s498 + $0xc0] sm:$0xff]
                %513 = vst [vmem:[%s499 + $0x30] sm:$0xff] %v512
                %v514 = vld [vmem:[%s498 + $0xc8] sm:$0xff]
                %515 = vst [vmem:[%s499 + $0x38] sm:$0xff] %v514
                %v516 = vld [vmem:[%s498 + $0x100] sm:$0xff]
                %517 = vst [vmem:[%s499 + $0x40] sm:$0xff] %v516
                %v518 = vld [vmem:[%s498 + $0x108] sm:$0xff]
                %519 = vst [vmem:[%s499 + $0x48] sm:$0xff] %v518
                %v520 = vld [vmem:[%s498 + $0x140] sm:$0xff]
                %521 = vst [vmem:[%s499 + $0x50] sm:$0xff] %v520
                %v522 = vld [vmem:[%s498 + $0x148] sm:$0xff]
                %523 = vst [vmem:[%s499 + $0x58] sm:$0xff] %v522
                %v524 = vld [vmem:[%s498 + $0x180] sm:$0xff]
                %525 = vst [vmem:[%s499 + $0x60] sm:$0xff] %v524
                %v526 = vld [vmem:[%s498 + $0x188] sm:$0xff]
                %527 = vst [vmem:[%s499 + $0x68] sm:$0xff] %v526
                %v528 = vld [vmem:[%s498 + $0x1c0] sm:$0xff]
                %529 = vst [vmem:[%s499 + $0x70] sm:$0xff] %v528
                %v530 = vld [vmem:[%s498 + $0x1c8] sm:$0xff]
                %531 = vst [vmem:[%s499 + $0x78] sm:$0xff] %v530
                %v532 = vld [vmem:[%s498 + $0x200] sm:$0xff]
                %533 = vst [vmem:[%s499 + $0x80] sm:$0xff] %v532
                %v534 = vld [vmem:[%s498 + $0x208] sm:$0xff]
                %535 = vst [vmem:[%s499 + $0x88] sm:$0xff] %v534
                %v536 = vld [vmem:[%s498 + $0x240] sm:$0xff]
                %537 = vst [vmem:[%s499 + $0x90] sm:$0xff] %v536
                %v538 = vld [vmem:[%s498 + $0x248] sm:$0xff]
                %539 = vst [vmem:[%s499 + $0x98] sm:$0xff] %v538
                %v540 = vld [vmem:[%s498 + $0x280] sm:$0xff]
                %541 = vst [vmem:[%s499 + $0xa0] sm:$0xff] %v540
                %v542 = vld [vmem:[%s498 + $0x288] sm:$0xff]
                %543 = vst [vmem:[%s499 + $0xa8] sm:$0xff] %v542
                %v544 = vld [vmem:[%s498 + $0x2c0] sm:$0xff]
                %545 = vst [vmem:[%s499 + $0xb0] sm:$0xff] %v544
                %v546 = vld [vmem:[%s498 + $0x2c8] sm:$0xff]
                %547 = vst [vmem:[%s499 + $0xb8] sm:$0xff] %v546
                %v548 = vld [vmem:[%s498 + $0x300] sm:$0xff]
                %549 = vst [vmem:[%s499 + $0xc0] sm:$0xff] %v548
                %v550 = vld [vmem:[%s498 + $0x308] sm:$0xff]
                %551 = vst [vmem:[%s499 + $0xc8] sm:$0xff] %v550
                %v552 = vld [vmem:[%s498 + $0x340] sm:$0xff]
                %553 = vst [vmem:[%s499 + $0xd0] sm:$0xff] %v552
                %v554 = vld [vmem:[%s498 + $0x348] sm:$0xff]
                %555 = vst [vmem:[%s499 + $0xd8] sm:$0xff] %v554
                %v556 = vld [vmem:[%s498 + $0x380] sm:$0xff]
                %557 = vst [vmem:[%s499 + $0xe0] sm:$0xff] %v556
                %v558 = vld [vmem:[%s498 + $0x388] sm:$0xff]
                %559 = vst [vmem:[%s499 + $0xe8] sm:$0xff] %v558
                %v560 = vld [vmem:[%s498 + $0x3c0] sm:$0xff]
                %561 = vst [vmem:[%s499 + $0xf0] sm:$0xff] %v560
                %v562 = vld [vmem:[%s498 + $0x3c8] sm:$0xff]
                %563 = vst [vmem:[%s499 + $0xf8] sm:$0xff] %v562
              $region89: #{decoder_forward.1} parent=83 // loop_footer
                %s497 = sadd.s32 1, %s493
              $region90: #{decoder_forward.1} parent=83 // loop_footer_branch
                %492 = sbr.rel target = $region86
              $region91: #{decoder_forward.1} parent=83 // loop_exit
                _
            $region84: #{decoder_forward.1} parent=79 // pred_fallthru
              _
            // Predicated region
            $region92: #{decoder_forward.1} parent=79 // pred_check
              _
            $region93: #{decoder_forward.1} parent=79 // pred_check_branch
              %565 = sbr.rel target = $region95
            $region94: #{decoder_forward.1} parent=79 // pred_region
              _
            $region95: #{decoder_forward.1} parent=79 // pred_fallthru
              _
          $region80: #{decoder_forward.1} parent=75 // pred_fallthru
            _
          %566 = vnop
        $region76: #{decoder_forward.1} parent=71 // pred_fallthru
          _
        // Predicated region
        $region96: #{decoder_forward.1} parent=71 // pred_check
          %p567 = pneg %p364
        $region97: #{decoder_forward.1} parent=71 // pred_check_branch
          %569 = sbr.rel (%p567) target = $region99
        $region98: #{decoder_forward.1} parent=71 // pred_region
          %s570 = smul.u32 4, %s24
          %p571 = scmp.lt.s32.totalorder %s570, 15
          %s572 = scalar_select %p571, %s570, 15
          %s573 = scalar_lea.vmem %s15, %s572
          %s574 = smul.u32 4, %s24
        $region99: #{decoder_forward.1} parent=71 // pred_fallthru
          _
      $region72: #{decoder_forward.1} parent=5 // pred_fallthru
        _
      %p575 = scmp.le.s32.totalorder 1, %s24
      %p576 = scmp.lt.s32.totalorder %s24, 5
      %p577 = pnand %p575, %p576
      %p578 = pneg %p577
      // Predicated region
      $region100: #{decoder_forward.1} parent=5 // pred_check
        _
      $region101: #{decoder_forward.1} parent=5 // pred_check_branch
        %580 = sbr.rel (%p577) target = $region103
      $region102: #{decoder_forward.1} parent=5 // pred_region
        %s581 = ssub.s32 %s24, 1
        %s582 = sand.u32 %s331, 1
        %s583 = sand.u32 %s331, 1
        %s584 = smul.addr %s583, 256
        %s585 = scalar_lea.vmem [#allocation3], %s584
        // Predicated region
        $region104: #{decoder_forward.1} parent=102 // pred_check
          %p586 = pneg %p344
        $region105: #{decoder_forward.1} parent=102 // pred_check_branch
          %588 = sbr.rel (%p586) target = $region107
        $region106: #{decoder_forward.1} parent=102 // pred_region
          _
        $region107: #{decoder_forward.1} parent=102 // pred_fallthru
          _
        %p589 = pneg %p45
        %p590 = pneg %p42
        %p591 = pneg %p66
        %p592 = pneg %p63
        %p593 = pneg %p87
        %p594 = pneg %p84
        %p595 = pneg %p108
        %p596 = pneg %p105
        %p597 = pneg %p129
        %p598 = pneg %p126
        %p599 = pneg %p150
        %p600 = pneg %p147
        %p601 = pneg %p171
        %p602 = pneg %p168
        %p603 = pneg %p192
        %p604 = pneg %p189
        %p605 = pneg %p213
        %p606 = pneg %p210
        %p607 = pneg %p234
        %p608 = pneg %p231
        %p609 = pneg %p255
        %p610 = pneg %p252
        %p611 = pneg %p276
        %p612 = pneg %p273
        %p613 = pneg %p297
        %p614 = pneg %p294
        %p615 = pneg %p318
        %p616 = pneg %p315
        %s617 = sand.u32 %s331, 1
        %s618 = sand.u32 %s331, 1
        %s619 = smul.addr %s618, 256
        %s620 = scalar_lea.vmem [#allocation3], %s619
        %p621 = pneg %p344
        %p622 = pneg %p341
        %s623 = smul.u32 4, %s29
        %p624 = scmp.lt.s32.totalorder %s623, 15
        %s625 = scalar_select %p624, %s623, 15
        %s626 = scalar_lea.vmem %s15, %s625
        %p627 = pneg %p370
        %p628 = pneg %p367
        %p629 = pneg %p396
        %p630 = pneg %p393
        %s631 = smul.u32 4, %s29
        %p632 = scmp.lt.s32.totalorder %s631, 15
        %s633 = scalar_select %p632, %s631, 15
        %s634 = smul.addr %s633, 8
        %s635 = scalar_lea.vmem %s16, %s634
        %p636 = pneg %p417
        %p637 = pneg %p414
        %s638 = smul.u32 4, %s29
        %s639 = smul.u32 4, %s29
        %p640 = scmp.lt.s32.totalorder %s639, 15
        %s641 = scalar_select %p640, %s639, 15
        %s642 = scalar_lea.vmem %s15, %s641
        %s643 = smul.u32 4, %s29
        %s644 = smul.u32 4, %s29
        %p645 = scmp.lt.s32.totalorder %s644, 15
        %s646 = scalar_select %p645, %s644, 15
        %s647 = smul.addr %s646, 8
        %s648 = scalar_lea.vmem %s16, %s647
        %s649 = smul.u32 4, %s29
        %p651 = scmp.eq.s32.totalorder %s29, 0
        // Predicated region
        $region108: #{decoder_forward.1} parent=102 // pred_check
          %p652 = pneg %p651
        $region109: #{decoder_forward.1} parent=102 // pred_check_branch
          %654 = sbr.rel (%p652) target = $region111
        $region110: #{decoder_forward.1} parent=102 // pred_region
          %v655 = vld [vmem:[%s0] sm:$0xff]
          %v656 = vld [vmem:[%s1] sm:$0xff]
          %v657 = vpack.c.bf16 %v655, %v655
          %v658 = vld [vmem:[%s2] sm:$0xff]
          %v659 = vld [vmem:[%s2 + $0x8] sm:$0xf]
          %v660 = vld [vmem:[%s2 + $0xc] sm:$0xff]
          %v661 = vld [vmem:[%s2 + $0x14] sm:$0xf]
          %v662 = vld [vmem:[%s2 + $0x18] sm:$0xff]
          %v663 = vld [vmem:[%s2 + $0x20] sm:$0xf]
          %v664 = vld [vmem:[%s2 + $0x24] sm:$0xff]
          %v665 = vld [vmem:[%s2 + $0x2c] sm:$0xf]
          %v666 = vld [vmem:[%s4] sm:$0x7]
          %v668 = vperm.slane %v666, 0
          %v669 = vperm.slane %v666, 1
          %v670 = vperm.slane %v666, 2
          %v682 = vunpack.c.l.b16 %v658
          %v683 = vunpack.c.h.b16 %v658
          %v684 = vunpack.c.l.b16 %v659
          %v685 = vunpack.c.l.b16 %v660
          %v686 = vunpack.c.h.b16 %v660
          %v687 = vunpack.c.l.b16 %v661
          %v688 = vunpack.c.l.b16 %v662
          %v689 = vunpack.c.h.b16 %v662
          %v690 = vunpack.c.l.b16 %v663
          %v691 = vunpack.c.l.b16 %v664
          %v692 = vunpack.c.h.b16 %v664
          %v693 = vunpack.c.l.b16 %v665
          %v694 = vpack.c.b16 %v685, %v682
          %v695 = vpack.c.b16 %v686, %v683
          %v696 = vpack.c.b16 %v687, %v684
          %v697 = vpack.c.b16 %v691, %v688
          %v698 = vpack.c.b16 %v692, %v689
          %v699 = vpack.c.b16 %v693, %v690
          %vm706 = vcmask 261120
          %v708 = vsel %vm706, %v657, 0
          %710 = vmatpush.bf16.msra.mxu0 0
          %711 = vmatpush.bf16.msra.mxu0 0
          %712 = vmatpush.bf16.msra.mxu0 0
          %713 = vmatpush.bf16.msra.mxu0 0
          %714 = vmatpush.bf16.msra.mxu0 0
          %715 = vmatpush.bf16.msra.mxu0 0
          %716 = vmatpush.bf16.msra.mxu0 %v697
          %717 = vmatpush.bf16.msra.mxu0 %v694
          %718 = vmatmul.bf16.gmra.mxu0 %v708
          %v719 = vpop.f32.mrf.mxu0
          %v720 = vadd.f32 %v668, %v719
          %v721 = vpop.f32.mrf.mxu0
          %722 = vdwg.mxu0
          %723 = vmatpush.bf16.msra.mxu0 0
          %724 = vmatpush.bf16.msra.mxu0 0
          %725 = vmatpush.bf16.msra.mxu0 0
          %726 = vmatpush.bf16.msra.mxu0 0
          %727 = vmatpush.bf16.msra.mxu0 0
          %728 = vmatpush.bf16.msra.mxu0 0
          %729 = vmatpush.bf16.msra.mxu0 %v698
          %730 = vmatpush.bf16.msra.mxu0 %v695
          %731 = vmatmul.bf16.gmra.mxu0 %v708
          %v732 = vpop.f32.mrf.mxu0
          %v733 = vadd.f32 %v669, %v732
          %v734 = vpop.f32.mrf.mxu0
          %735 = vdwg.mxu0
          %736 = vmatpush.bf16.msra.mxu0 0
          %737 = vmatpush.bf16.msra.mxu0 0
          %738 = vmatpush.bf16.msra.mxu0 0
          %739 = vmatpush.bf16.msra.mxu0 0
          %740 = vmatpush.bf16.msra.mxu0 0
          %741 = vmatpush.bf16.msra.mxu0 0
          %742 = vmatpush.bf16.msra.mxu0 %v699
          %743 = vmatpush.bf16.msra.mxu0 %v696
          %744 = vmatmul.bf16.gmra.mxu0 %v708
          %v745 = vpop.f32.mrf.mxu0
          %v746 = vadd.f32 %v670, %v745
          %v747 = vpop.f32.mrf.mxu0
          %748 = vdwg.mxu0
          %v749 = vpack.c.bf16 %v656, %v656
          %v750 = vld [vmem:[%s3] sm:$0xff]
          %v751 = vld [vmem:[%s3 + $0x8] sm:$0xf]
          %v752 = vld [vmem:[%s3 + $0xc] sm:$0xff]
          %v753 = vld [vmem:[%s3 + $0x14] sm:$0xf]
          %v754 = vld [vmem:[%s3 + $0x18] sm:$0xff]
          %v755 = vld [vmem:[%s3 + $0x20] sm:$0xf]
          %v756 = vld [vmem:[%s3 + $0x24] sm:$0xff]
          %v757 = vld [vmem:[%s3 + $0x2c] sm:$0xf]
          %v758 = vld [vmem:[%s3 + $0x30] sm:$0xff]
          %v759 = vld [vmem:[%s3 + $0x38] sm:$0xf]
          %v760 = vld [vmem:[%s3 + $0x3c] sm:$0xff]
          %v761 = vld [vmem:[%s3 + $0x44] sm:$0xf]
          %v762 = vld [vmem:[%s3 + $0x48] sm:$0xff]
          %v763 = vld [vmem:[%s3 + $0x50] sm:$0xf]
          %v764 = vld [vmem:[%s3 + $0x54] sm:$0xff]
          %v765 = vld [vmem:[%s3 + $0x5c] sm:$0xf]
          %v766 = vld [vmem:[%s3 + $0x60] sm:$0xff]
          %v767 = vld [vmem:[%s3 + $0x68] sm:$0xf]
          %v768 = vld [vmem:[%s3 + $0x6c] sm:$0xff]
          %v769 = vld [vmem:[%s3 + $0x74] sm:$0xf]
          %v770 = vld [vmem:[%s3 + $0x78] sm:$0xff]
          %v771 = vld [vmem:[%s3 + $0x80] sm:$0xf]
          %v772 = vld [vmem:[%s3 + $0x84] sm:$0xff]
          %v773 = vld [vmem:[%s3 + $0x8c] sm:$0xf]
          %v774 = vld [vmem:[%s3 + $0x90] sm:$0xff]
          %v775 = vld [vmem:[%s3 + $0x98] sm:$0xf]
          %v776 = vld [vmem:[%s3 + $0x9c] sm:$0xff]
          %v777 = vld [vmem:[%s3 + $0xa4] sm:$0xf]
          %v778 = vld [vmem:[%s3 + $0xa8] sm:$0xff]
          %v779 = vld [vmem:[%s3 + $0xb0] sm:$0xf]
          %v780 = vld [vmem:[%s3 + $0xb4] sm:$0xff]
          %v781 = vld [vmem:[%s3 + $0xbc] sm:$0xf]
          %v814 = vunpack.c.l.b16 %v750
          %v815 = vunpack.c.h.b16 %v750
          %v816 = vunpack.c.l.b16 %v751
          %v817 = vunpack.c.l.b16 %v752
          %v818 = vunpack.c.h.b16 %v752
          %v819 = vunpack.c.l.b16 %v753
          %v820 = vunpack.c.l.b16 %v754
          %v821 = vunpack.c.h.b16 %v754
          %v822 = vunpack.c.l.b16 %v755
          %v823 = vunpack.c.l.b16 %v756
          %v824 = vunpack.c.h.b16 %v756
          %v825 = vunpack.c.l.b16 %v757
          %v826 = vunpack.c.l.b16 %v758
          %v827 = vunpack.c.h.b16 %v758
          %v828 = vunpack.c.l.b16 %v759
          %v829 = vunpack.c.l.b16 %v760
          %v830 = vunpack.c.h.b16 %v760
          %v831 = vunpack.c.l.b16 %v761
          %v832 = vunpack.c.l.b16 %v762
          %v833 = vunpack.c.h.b16 %v762
          %v834 = vunpack.c.l.b16 %v763
          %v835 = vunpack.c.l.b16 %v764
          %v836 = vunpack.c.h.b16 %v764
          %v837 = vunpack.c.l.b16 %v765
          %v838 = vunpack.c.l.b16 %v766
          %v839 = vunpack.c.h.b16 %v766
          %v840 = vunpack.c.l.b16 %v767
          %v841 = vunpack.c.l.b16 %v768
          %v842 = vunpack.c.h.b16 %v768
          %v843 = vunpack.c.l.b16 %v769
          %v844 = vunpack.c.l.b16 %v770
          %v845 = vunpack.c.h.b16 %v770
          %v846 = vunpack.c.l.b16 %v771
          %v847 = vunpack.c.l.b16 %v772
          %v848 = vunpack.c.h.b16 %v772
          %v849 = vunpack.c.l.b16 %v773
          %v850 = vunpack.c.l.b16 %v774
          %v851 = vunpack.c.h.b16 %v774
          %v852 = vunpack.c.l.b16 %v775
          %v853 = vunpack.c.l.b16 %v776
          %v854 = vunpack.c.h.b16 %v776
          %v855 = vunpack.c.l.b16 %v777
          %v856 = vunpack.c.l.b16 %v778
          %v857 = vunpack.c.h.b16 %v778
          %v858 = vunpack.c.l.b16 %v779
          %v859 = vunpack.c.l.b16 %v780
          %v860 = vunpack.c.h.b16 %v780
          %v861 = vunpack.c.l.b16 %v781
          %v862 = vpack.c.b16 %v817, %v814
          %v863 = vpack.c.b16 %v818, %v815
          %v864 = vpack.c.b16 %v819, %v816
          %v865 = vpack.c.b16 %v823, %v820
          %v866 = vpack.c.b16 %v824, %v821
          %v867 = vpack.c.b16 %v825, %v822
          %v868 = vpack.c.b16 %v829, %v826
          %v869 = vpack.c.b16 %v830, %v827
          %v870 = vpack.c.b16 %v831, %v828
          %v871 = vpack.c.b16 %v835, %v832
          %v872 = vpack.c.b16 %v836, %v833
          %v873 = vpack.c.b16 %v837, %v834
          %v874 = vpack.c.b16 %v841, %v838
          %v875 = vpack.c.b16 %v842, %v839
          %v876 = vpack.c.b16 %v843, %v840
          %v877 = vpack.c.b16 %v847, %v844
          %v878 = vpack.c.b16 %v848, %v845
          %v879 = vpack.c.b16 %v849, %v846
          %v880 = vpack.c.b16 %v853, %v850
          %v881 = vpack.c.b16 %v854, %v851
          %v882 = vpack.c.b16 %v855, %v852
          %v883 = vpack.c.b16 %v859, %v856
          %v884 = vpack.c.b16 %v860, %v857
          %v885 = vpack.c.b16 %v861, %v858
          %910 = vmatpush.bf16.msra.mxu0 %v883
          %911 = vmatpush.bf16.msra.mxu0 %v880
          %912 = vmatpush.bf16.msra.mxu0 %v877
          %913 = vmatpush.bf16.msra.mxu0 %v874
          %914 = vmatpush.bf16.msra.mxu0 %v871
          %915 = vmatpush.bf16.msra.mxu0 %v868
          %916 = vmatpush.bf16.msra.mxu0 %v865
          %917 = vmatpush.bf16.msra.mxu0 %v862
          %918 = vmatmul.bf16.gmra.mxu0 %v749
          %v919 = vpop.f32.mrf.mxu0
          %v920 = vadd.f32 0.0, %v919
          %v921 = vpop.f32.mrf.mxu0
          %922 = vdwg.mxu0
          %923 = vmatpush.bf16.msra.mxu0 %v884
          %924 = vmatpush.bf16.msra.mxu0 %v881
          %925 = vmatpush.bf16.msra.mxu0 %v878
          %926 = vmatpush.bf16.msra.mxu0 %v875
          %927 = vmatpush.bf16.msra.mxu0 %v872
          %928 = vmatpush.bf16.msra.mxu0 %v869
          %929 = vmatpush.bf16.msra.mxu0 %v866
          %930 = vmatpush.bf16.msra.mxu0 %v863
          %931 = vmatmul.bf16.gmra.mxu0 %v749
          %v932 = vpop.f32.mrf.mxu0
          %v933 = vadd.f32 0.0, %v932
          %v934 = vpop.f32.mrf.mxu0
          %935 = vdwg.mxu0
          %936 = vmatpush.bf16.msra.mxu0 %v885
          %937 = vmatpush.bf16.msra.mxu0 %v882
          %938 = vmatpush.bf16.msra.mxu0 %v879
          %939 = vmatpush.bf16.msra.mxu0 %v876
          %940 = vmatpush.bf16.msra.mxu0 %v873
          %941 = vmatpush.bf16.msra.mxu0 %v870
          %942 = vmatpush.bf16.msra.mxu0 %v867
          %943 = vmatpush.bf16.msra.mxu0 %v864
          %944 = vmatmul.bf16.gmra.mxu0 %v749
          %v945 = vpop.f32.mrf.mxu0
          %v946 = vadd.f32 0.0, %v945
          %v947 = vpop.f32.mrf.mxu0
          %948 = vdwg.mxu0
          %v949 = vadd.f32 %v720, %v920
          %v950 = vxor.u32 %v949, 2147483648
          %v951 = vmul.f32 %v950, 1.442695
          %v952 = vpow.pop %v951
          %v953 = vadd.f32 %v952, 1.0
          %v954 = vrcp.pop %v953
          %v955 = vmul.f32 %v953, %v954
          %v956 = vsub.f32 1.0, %v955
          %v957 = vmul.f32 %v954, %v956
          %v958 = vadd.f32 %v954, %v957
          %vm959 = vweird.f32 %v953
          %vm960 = vweird.f32 %v954
          %vm961 = vmor %vm959, %vm960
          %v962 = vsel %vm961, %v954, %v958
          %v963 = vand.u32 2147483647, %v953
          %vm964 = vcmp.eq.f32.partialorder %v963, 8.507059e+37
          %v965 = vand.u32 %v953, 2147483648
          %v966 = vor.u32 1.1754944e-38, %v965
          %v967 = vsel %vm964, %v966, %v962
          %v968 = vmul.f32 1.0, %v967
          %v969 = vadd.f32 %v733, %v933
          %v970 = vxor.u32 %v969, 2147483648
          %v971 = vmul.f32 %v970, 1.442695
          %v972 = vpow.pop %v971
          %v973 = vadd.f32 %v972, 1.0
          %v974 = vrcp.pop %v973
          %v975 = vmul.f32 %v973, %v974
          %v976 = vsub.f32 1.0, %v975
          %v977 = vmul.f32 %v974, %v976
          %v978 = vadd.f32 %v974, %v977
          %vm979 = vweird.f32 %v973
          %vm980 = vweird.f32 %v974
          %vm981 = vmor %vm979, %vm980
          %v982 = vsel %vm981, %v974, %v978
          %v983 = vand.u32 2147483647, %v973
          %vm984 = vcmp.eq.f32.partialorder %v983, 8.507059e+37
          %v985 = vand.u32 %v973, 2147483648
          %v986 = vor.u32 1.1754944e-38, %v985
          %v987 = vsel %vm984, %v986, %v982
          %v988 = vmul.f32 1.0, %v987
          %v989 = vld [vmem:[%s5] sm:$0x1]
          %v991 = vperm.slane %v989, 0
          %v993 = vadd.f32 %v946, %v991
          %v994 = vmul.f32 %v968, %v993
          %v995 = vadd.f32 %v746, %v994
          %v996 = vtanh.pop %v995
          %v997 = vsub.f32 1.0, %v988
          %v998 = vmul.f32 %v997, %v996
          %v999 = vmul.f32 %v988, %v656
          %v1000 = vadd.f32 %v998, %v999
          %1001 = vst [vmem:[%s17] sm:$0xff] %v1000
          %s1002 = scalar_lea.vmem %s1, 8
          %v1003 = vld [vmem:[%s1002] sm:$0xff]
          %v1004 = vpack.c.bf16 %v1000, %v1000
          %v1005 = vld [vmem:[%s6] sm:$0xff]
          %v1006 = vld [vmem:[%s6 + $0x8] sm:$0xf]
          %v1007 = vld [vmem:[%s6 + $0xc] sm:$0xff]
          %v1008 = vld [vmem:[%s6 + $0x14] sm:$0xf]
          %v1009 = vld [vmem:[%s6 + $0x18] sm:$0xff]
          %v1010 = vld [vmem:[%s6 + $0x20] sm:$0xf]
          %v1011 = vld [vmem:[%s6 + $0x24] sm:$0xff]
          %v1012 = vld [vmem:[%s6 + $0x2c] sm:$0xf]
          %v1013 = vld [vmem:[%s6 + $0x30] sm:$0xff]
          %v1014 = vld [vmem:[%s6 + $0x38] sm:$0xf]
          %v1015 = vld [vmem:[%s6 + $0x3c] sm:$0xff]
          %v1016 = vld [vmem:[%s6 + $0x44] sm:$0xf]
          %v1017 = vld [vmem:[%s6 + $0x48] sm:$0xff]
          %v1018 = vld [vmem:[%s6 + $0x50] sm:$0xf]
          %v1019 = vld [vmem:[%s6 + $0x54] sm:$0xff]
          %v1020 = vld [vmem:[%s6 + $0x5c] sm:$0xf]
          %v1021 = vld [vmem:[%s6 + $0x60] sm:$0xff]
          %v1022 = vld [vmem:[%s6 + $0x68] sm:$0xf]
          %v1023 = vld [vmem:[%s6 + $0x6c] sm:$0xff]
          %v1024 = vld [vmem:[%s6 + $0x74] sm:$0xf]
          %v1025 = vld [vmem:[%s6 + $0x78] sm:$0xff]
          %v1026 = vld [vmem:[%s6 + $0x80] sm:$0xf]
          %v1027 = vld [vmem:[%s6 + $0x84] sm:$0xff]
          %v1028 = vld [vmem:[%s6 + $0x8c] sm:$0xf]
          %v1029 = vld [vmem:[%s6 + $0x90] sm:$0xff]
          %v1030 = vld [vmem:[%s6 + $0x98] sm:$0xf]
          %v1031 = vld [vmem:[%s6 + $0x9c] sm:$0xff]
          %v1032 = vld [vmem:[%s6 + $0xa4] sm:$0xf]
          %v1033 = vld [vmem:[%s6 + $0xa8] sm:$0xff]
          %v1034 = vld [vmem:[%s6 + $0xb0] sm:$0xf]
          %v1035 = vld [vmem:[%s6 + $0xb4] sm:$0xff]
          %v1036 = vld [vmem:[%s6 + $0xbc] sm:$0xf]
          %v1037 = vld [vmem:[%s8] sm:$0x7]
          %v1039 = vperm.slane %v1037, 0
          %v1040 = vperm.slane %v1037, 1
          %v1041 = vperm.slane %v1037, 2
          %v1077 = vunpack.c.l.b16 %v1005
          %v1078 = vunpack.c.h.b16 %v1005
          %v1079 = vunpack.c.l.b16 %v1006
          %v1080 = vunpack.c.l.b16 %v1007
          %v1081 = vunpack.c.h.b16 %v1007
          %v1082 = vunpack.c.l.b16 %v1008
          %v1083 = vunpack.c.l.b16 %v1009
          %v1084 = vunpack.c.h.b16 %v1009
          %v1085 = vunpack.c.l.b16 %v1010
          %v1086 = vunpack.c.l.b16 %v1011
          %v1087 = vunpack.c.h.b16 %v1011
          %v1088 = vunpack.c.l.b16 %v1012
          %v1089 = vunpack.c.l.b16 %v1013
          %v1090 = vunpack.c.h.b16 %v1013
          %v1091 = vunpack.c.l.b16 %v1014
          %v1092 = vunpack.c.l.b16 %v1015
          %v1093 = vunpack.c.h.b16 %v1015
          %v1094 = vunpack.c.l.b16 %v1016
          %v1095 = vunpack.c.l.b16 %v1017
          %v1096 = vunpack.c.h.b16 %v1017
          %v1097 = vunpack.c.l.b16 %v1018
          %v1098 = vunpack.c.l.b16 %v1019
          %v1099 = vunpack.c.h.b16 %v1019
          %v1100 = vunpack.c.l.b16 %v1020
          %v1101 = vunpack.c.l.b16 %v1021
          %v1102 = vunpack.c.h.b16 %v1021
          %v1103 = vunpack.c.l.b16 %v1022
          %v1104 = vunpack.c.l.b16 %v1023
          %v1105 = vunpack.c.h.b16 %v1023
          %v1106 = vunpack.c.l.b16 %v1024
          %v1107 = vunpack.c.l.b16 %v1025
          %v1108 = vunpack.c.h.b16 %v1025
          %v1109 = vunpack.c.l.b16 %v1026
          %v1110 = vunpack.c.l.b16 %v1027
          %v1111 = vunpack.c.h.b16 %v1027
          %v1112 = vunpack.c.l.b16 %v1028
          %v1113 = vunpack.c.l.b16 %v1029
          %v1114 = vunpack.c.h.b16 %v1029
          %v1115 = vunpack.c.l.b16 %v1030
          %v1116 = vunpack.c.l.b16 %v1031
          %v1117 = vunpack.c.h.b16 %v1031
          %v1118 = vunpack.c.l.b16 %v1032
          %v1119 = vunpack.c.l.b16 %v1033
          %v1120 = vunpack.c.h.b16 %v1033
          %v1121 = vunpack.c.l.b16 %v1034
          %v1122 = vunpack.c.l.b16 %v1035
          %v1123 = vunpack.c.h.b16 %v1035
          %v1124 = vunpack.c.l.b16 %v1036
          %v1125 = vpack.c.b16 %v1080, %v1077
          %v1126 = vpack.c.b16 %v1081, %v1078
          %v1127 = vpack.c.b16 %v1082, %v1079
          %v1128 = vpack.c.b16 %v1086, %v1083
          %v1129 = vpack.c.b16 %v1087, %v1084
          %v1130 = vpack.c.b16 %v1088, %v1085
          %v1131 = vpack.c.b16 %v1092, %v1089
          %v1132 = vpack.c.b16 %v1093, %v1090
          %v1133 = vpack.c.b16 %v1094, %v1091
          %v1134 = vpack.c.b16 %v1098, %v1095
          %v1135 = vpack.c.b16 %v1099, %v1096
          %v1136 = vpack.c.b16 %v1100, %v1097
          %v1137 = vpack.c.b16 %v1104, %v1101
          %v1138 = vpack.c.b16 %v1105, %v1102
          %v1139 = vpack.c.b16 %v1106, %v1103
          %v1140 = vpack.c.b16 %v1110, %v1107
          %v1141 = vpack.c.b16 %v1111, %v1108
          %v1142 = vpack.c.b16 %v1112, %v1109
          %v1143 = vpack.c.b16 %v1116, %v1113
          %v1144 = vpack.c.b16 %v1117, %v1114
          %v1145 = vpack.c.b16 %v1118, %v1115
          %v1146 = vpack.c.b16 %v1122, %v1119
          %v1147 = vpack.c.b16 %v1123, %v1120
          %v1148 = vpack.c.b16 %v1124, %v1121
          %1173 = vmatpush.bf16.msra.mxu0 %v1146
          %1174 = vmatpush.bf16.msra.mxu0 %v1143
          %1175 = vmatpush.bf16.msra.mxu0 %v1140
          %1176 = vmatpush.bf16.msra.mxu0 %v1137
          %1177 = vmatpush.bf16.msra.mxu0 %v1134
          %1178 = vmatpush.bf16.msra.mxu0 %v1131
          %1179 = vmatpush.bf16.msra.mxu0 %v1128
          %1180 = vmatpush.bf16.msra.mxu0 %v1125
          %1181 = vmatmul.bf16.gmra.mxu0 %v1004
          %v1182 = vpop.f32.mrf.mxu0
          %v1183 = vadd.f32 %v1039, %v1182
          %v1184 = vpop.f32.mrf.mxu0
          %1185 = vdwg.mxu0
          %1186 = vmatpush.bf16.msra.mxu0 %v1147
          %1187 = vmatpush.bf16.msra.mxu0 %v1144
          %1188 = vmatpush.bf16.msra.mxu0 %v1141
          %1189 = vmatpush.bf16.msra.mxu0 %v1138
          %1190 = vmatpush.bf16.msra.mxu0 %v1135
          %1191 = vmatpush.bf16.msra.mxu0 %v1132
          %1192 = vmatpush.bf16.msra.mxu0 %v1129
          %1193 = vmatpush.bf16.msra.mxu0 %v1126
          %1194 = vmatmul.bf16.gmra.mxu0 %v1004
          %v1195 = vpop.f32.mrf.mxu0
          %v1196 = vadd.f32 %v1040, %v1195
          %v1197 = vpop.f32.mrf.mxu0
          %1198 = vdwg.mxu0
          %1199 = vmatpush.bf16.msra.mxu0 %v1148
          %1200 = vmatpush.bf16.msra.mxu0 %v1145
          %1201 = vmatpush.bf16.msra.mxu0 %v1142
          %1202 = vmatpush.bf16.msra.mxu0 %v1139
          %1203 = vmatpush.bf16.msra.mxu0 %v1136
          %1204 = vmatpush.bf16.msra.mxu0 %v1133
          %1205 = vmatpush.bf16.msra.mxu0 %v1130
          %1206 = vmatpush.bf16.msra.mxu0 %v1127
          %1207 = vmatmul.bf16.gmra.mxu0 %v1004
          %v1208 = vpop.f32.mrf.mxu0
          %v1209 = vadd.f32 %v1041, %v1208
          %v1210 = vpop.f32.mrf.mxu0
          %1211 = vdwg.mxu0
          %v1212 = vpack.c.bf16 %v1003, %v1003
          %v1213 = vld [vmem:[%s7] sm:$0xff]
          %v1214 = vld [vmem:[%s7 + $0x8] sm:$0xf]
          %v1215 = vld [vmem:[%s7 + $0xc] sm:$0xff]
          %v1216 = vld [vmem:[%s7 + $0x14] sm:$0xf]
          %v1217 = vld [vmem:[%s7 + $0x18] sm:$0xff]
          %v1218 = vld [vmem:[%s7 + $0x20] sm:$0xf]
          %v1219 = vld [vmem:[%s7 + $0x24] sm:$0xff]
          %v1220 = vld [vmem:[%s7 + $0x2c] sm:$0xf]
          %v1221 = vld [vmem:[%s7 + $0x30] sm:$0xff]
          %v1222 = vld [vmem:[%s7 + $0x38] sm:$0xf]
          %v1223 = vld [vmem:[%s7 + $0x3c] sm:$0xff]
          %v1224 = vld [vmem:[%s7 + $0x44] sm:$0xf]
          %v1225 = vld [vmem:[%s7 + $0x48] sm:$0xff]
          %v1226 = vld [vmem:[%s7 + $0x50] sm:$0xf]
          %v1227 = vld [vmem:[%s7 + $0x54] sm:$0xff]
          %v1228 = vld [vmem:[%s7 + $0x5c] sm:$0xf]
          %v1229 = vld [vmem:[%s7 + $0x60] sm:$0xff]
          %v1230 = vld [vmem:[%s7 + $0x68] sm:$0xf]
          %v1231 = vld [vmem:[%s7 + $0x6c] sm:$0xff]
          %v1232 = vld [vmem:[%s7 + $0x74] sm:$0xf]
          %v1233 = vld [vmem:[%s7 + $0x78] sm:$0xff]
          %v1234 = vld [vmem:[%s7 + $0x80] sm:$0xf]
          %v1235 = vld [vmem:[%s7 + $0x84] sm:$0xff]
          %v1236 = vld [vmem:[%s7 + $0x8c] sm:$0xf]
          %v1237 = vld [vmem:[%s7 + $0x90] sm:$0xff]
          %v1238 = vld [vmem:[%s7 + $0x98] sm:$0xf]
          %v1239 = vld [vmem:[%s7 + $0x9c] sm:$0xff]
          %v1240 = vld [vmem:[%s7 + $0xa4] sm:$0xf]
          %v1241 = vld [vmem:[%s7 + $0xa8] sm:$0xff]
          %v1242 = vld [vmem:[%s7 + $0xb0] sm:$0xf]
          %v1243 = vld [vmem:[%s7 + $0xb4] sm:$0xff]
          %v1244 = vld [vmem:[%s7 + $0xbc] sm:$0xf]
          %v1277 = vunpack.c.l.b16 %v1213
          %v1278 = vunpack.c.h.b16 %v1213
          %v1279 = vunpack.c.l.b16 %v1214
          %v1280 = vunpack.c.l.b16 %v1215
          %v1281 = vunpack.c.h.b16 %v1215
          %v1282 = vunpack.c.l.b16 %v1216
          %v1283 = vunpack.c.l.b16 %v1217
          %v1284 = vunpack.c.h.b16 %v1217
          %v1285 = vunpack.c.l.b16 %v1218
          %v1286 = vunpack.c.l.b16 %v1219
          %v1287 = vunpack.c.h.b16 %v1219
          %v1288 = vunpack.c.l.b16 %v1220
          %v1289 = vunpack.c.l.b16 %v1221
          %v1290 = vunpack.c.h.b16 %v1221
          %v1291 = vunpack.c.l.b16 %v1222
          %v1292 = vunpack.c.l.b16 %v1223
          %v1293 = vunpack.c.h.b16 %v1223
          %v1294 = vunpack.c.l.b16 %v1224
          %v1295 = vunpack.c.l.b16 %v1225
          %v1296 = vunpack.c.h.b16 %v1225
          %v1297 = vunpack.c.l.b16 %v1226
          %v1298 = vunpack.c.l.b16 %v1227
          %v1299 = vunpack.c.h.b16 %v1227
          %v1300 = vunpack.c.l.b16 %v1228
          %v1301 = vunpack.c.l.b16 %v1229
          %v1302 = vunpack.c.h.b16 %v1229
          %v1303 = vunpack.c.l.b16 %v1230
          %v1304 = vunpack.c.l.b16 %v1231
          %v1305 = vunpack.c.h.b16 %v1231
          %v1306 = vunpack.c.l.b16 %v1232
          %v1307 = vunpack.c.l.b16 %v1233
          %v1308 = vunpack.c.h.b16 %v1233
          %v1309 = vunpack.c.l.b16 %v1234
          %v1310 = vunpack.c.l.b16 %v1235
          %v1311 = vunpack.c.h.b16 %v1235
          %v1312 = vunpack.c.l.b16 %v1236
          %v1313 = vunpack.c.l.b16 %v1237
          %v1314 = vunpack.c.h.b16 %v1237
          %v1315 = vunpack.c.l.b16 %v1238
          %v1316 = vunpack.c.l.b16 %v1239
          %v1317 = vunpack.c.h.b16 %v1239
          %v1318 = vunpack.c.l.b16 %v1240
          %v1319 = vunpack.c.l.b16 %v1241
          %v1320 = vunpack.c.h.b16 %v1241
          %v1321 = vunpack.c.l.b16 %v1242
          %v1322 = vunpack.c.l.b16 %v1243
          %v1323 = vunpack.c.h.b16 %v1243
          %v1324 = vunpack.c.l.b16 %v1244
          %v1325 = vpack.c.b16 %v1280, %v1277
          %v1326 = vpack.c.b16 %v1281, %v1278
          %v1327 = vpack.c.b16 %v1282, %v1279
          %v1328 = vpack.c.b16 %v1286, %v1283
          %v1329 = vpack.c.b16 %v1287, %v1284
          %v1330 = vpack.c.b16 %v1288, %v1285
          %v1331 = vpack.c.b16 %v1292, %v1289
          %v1332 = vpack.c.b16 %v1293, %v1290
          %v1333 = vpack.c.b16 %v1294, %v1291
          %v1334 = vpack.c.b16 %v1298, %v1295
          %v1335 = vpack.c.b16 %v1299, %v1296
          %v1336 = vpack.c.b16 %v1300, %v1297
          %v1337 = vpack.c.b16 %v1304, %v1301
          %v1338 = vpack.c.b16 %v1305, %v1302
          %v1339 = vpack.c.b16 %v1306, %v1303
          %v1340 = vpack.c.b16 %v1310, %v1307
          %v1341 = vpack.c.b16 %v1311, %v1308
          %v1342 = vpack.c.b16 %v1312, %v1309
          %v1343 = vpack.c.b16 %v1316, %v1313
          %v1344 = vpack.c.b16 %v1317, %v1314
          %v1345 = vpack.c.b16 %v1318, %v1315
          %v1346 = vpack.c.b16 %v1322, %v1319
          %v1347 = vpack.c.b16 %v1323, %v1320
          %v1348 = vpack.c.b16 %v1324, %v1321
          %1373 = vmatpush.bf16.msra.mxu0 %v1346
          %1374 = vmatpush.bf16.msra.mxu0 %v1343
          %1375 = vmatpush.bf16.msra.mxu0 %v1340
          %1376 = vmatpush.bf16.msra.mxu0 %v1337
          %1377 = vmatpush.bf16.msra.mxu0 %v1334
          %1378 = vmatpush.bf16.msra.mxu0 %v1331
          %1379 = vmatpush.bf16.msra.mxu0 %v1328
          %1380 = vmatpush.bf16.msra.mxu0 %v1325
          %1381 = vmatmul.bf16.gmra.mxu0 %v1212
          %v1382 = vpop.f32.mrf.mxu0
          %v1383 = vadd.f32 0.0, %v1382
          %v1384 = vpop.f32.mrf.mxu0
          %1385 = vdwg.mxu0
          %1386 = vmatpush.bf16.msra.mxu0 %v1347
          %1387 = vmatpush.bf16.msra.mxu0 %v1344
          %1388 = vmatpush.bf16.msra.mxu0 %v1341
          %1389 = vmatpush.bf16.msra.mxu0 %v1338
          %1390 = vmatpush.bf16.msra.mxu0 %v1335
          %1391 = vmatpush.bf16.msra.mxu0 %v1332
          %1392 = vmatpush.bf16.msra.mxu0 %v1329
          %1393 = vmatpush.bf16.msra.mxu0 %v1326
          %1394 = vmatmul.bf16.gmra.mxu0 %v1212
          %v1395 = vpop.f32.mrf.mxu0
          %v1396 = vadd.f32 0.0, %v1395
          %v1397 = vpop.f32.mrf.mxu0
          %1398 = vdwg.mxu0
          %1399 = vmatpush.bf16.msra.mxu0 %v1348
          %1400 = vmatpush.bf16.msra.mxu0 %v1345
          %1401 = vmatpush.bf16.msra.mxu0 %v1342
          %1402 = vmatpush.bf16.msra.mxu0 %v1339
          %1403 = vmatpush.bf16.msra.mxu0 %v1336
          %1404 = vmatpush.bf16.msra.mxu0 %v1333
          %1405 = vmatpush.bf16.msra.mxu0 %v1330
          %1406 = vmatpush.bf16.msra.mxu0 %v1327
          %1407 = vmatmul.bf16.gmra.mxu0 %v1212
          %v1408 = vpop.f32.mrf.mxu0
          %v1409 = vadd.f32 0.0, %v1408
          %v1410 = vpop.f32.mrf.mxu0
          %1411 = vdwg.mxu0
          %v1412 = vadd.f32 %v1183, %v1383
          %v1413 = vxor.u32 %v1412, 2147483648
          %v1414 = vmul.f32 %v1413, 1.442695
          %v1415 = vpow.pop %v1414
          %v1416 = vadd.f32 %v1415, 1.0
          %v1417 = vrcp.pop %v1416
          %v1418 = vmul.f32 %v1416, %v1417
          %v1419 = vsub.f32 1.0, %v1418
          %v1420 = vmul.f32 %v1417, %v1419
          %v1421 = vadd.f32 %v1417, %v1420
          %vm1422 = vweird.f32 %v1416
          %vm1423 = vweird.f32 %v1417
          %vm1424 = vmor %vm1422, %vm1423
          %v1425 = vsel %vm1424, %v1417, %v1421
          %v1426 = vand.u32 2147483647, %v1416
          %vm1427 = vcmp.eq.f32.partialorder %v1426, 8.507059e+37
          %v1428 = vand.u32 %v1416, 2147483648
          %v1429 = vor.u32 1.1754944e-38, %v1428
          %v1430 = vsel %vm1427, %v1429, %v1425
          %v1431 = vmul.f32 1.0, %v1430
          %v1432 = vadd.f32 %v1196, %v1396
          %v1433 = vxor.u32 %v1432, 2147483648
          %v1434 = vmul.f32 %v1433, 1.442695
          %v1435 = vpow.pop %v1434
          %v1436 = vadd.f32 %v1435, 1.0
          %v1437 = vrcp.pop %v1436
          %v1438 = vmul.f32 %v1436, %v1437
          %v1439 = vsub.f32 1.0, %v1438
          %v1440 = vmul.f32 %v1437, %v1439
          %v1441 = vadd.f32 %v1437, %v1440
          %vm1442 = vweird.f32 %v1436
          %vm1443 = vweird.f32 %v1437
          %vm1444 = vmor %vm1442, %vm1443
          %v1445 = vsel %vm1444, %v1437, %v1441
          %v1446 = vand.u32 2147483647, %v1436
          %vm1447 = vcmp.eq.f32.partialorder %v1446, 8.507059e+37
          %v1448 = vand.u32 %v1436, 2147483648
          %v1449 = vor.u32 1.1754944e-38, %v1448
          %v1450 = vsel %vm1447, %v1449, %v1445
          %v1451 = vmul.f32 1.0, %v1450
          %v1452 = vld [vmem:[%s9] sm:$0x1]
          %v1454 = vperm.slane %v1452, 0
          %v1456 = vadd.f32 %v1409, %v1454
          %v1457 = vmul.f32 %v1431, %v1456
          %v1458 = vadd.f32 %v1209, %v1457
          %v1459 = vtanh.pop %v1458
          %v1460 = vsub.f32 1.0, %v1451
          %v1461 = vmul.f32 %v1460, %v1459
          %v1462 = vmul.f32 %v1451, %v1003
          %v1463 = vadd.f32 %v1461, %v1462
          %s1464 = scalar_lea.vmem %s17, 8
          %1465 = vst [vmem:[%s1464] sm:$0xff] %v1463
          %v1466 = vpack.c.bf16 %v1463, %v1463
          %v1467 = vld [vmem:[%s10] sm:$0xf]
          %v1468 = vld [vmem:[%s10 + $0x4] sm:$0xf]
          %v1469 = vld [vmem:[%s10 + $0x8] sm:$0xf]
          %v1470 = vld [vmem:[%s10 + $0xc] sm:$0xf]
          %v1471 = vld [vmem:[%s10 + $0x10] sm:$0xf]
          %v1472 = vld [vmem:[%s10 + $0x14] sm:$0xf]
          %v1473 = vld [vmem:[%s10 + $0x18] sm:$0xf]
          %v1474 = vld [vmem:[%s10 + $0x1c] sm:$0xf]
          %v1475 = vld [vmem:[%s10 + $0x20] sm:$0xf]
          %v1476 = vld [vmem:[%s10 + $0x24] sm:$0xf]
          %v1477 = vld [vmem:[%s10 + $0x28] sm:$0xf]
          %v1478 = vld [vmem:[%s10 + $0x2c] sm:$0xf]
          %v1479 = vld [vmem:[%s10 + $0x30] sm:$0xf]
          %v1480 = vld [vmem:[%s10 + $0x34] sm:$0xf]
          %v1481 = vld [vmem:[%s10 + $0x38] sm:$0xf]
          %v1482 = vld [vmem:[%s10 + $0x3c] sm:$0xf]
          %v1483 = vld [vmem:[%s11] sm:$0x1]
          %v1485 = vperm.slane %v1483, 0
          %v1503 = vunpack.c.l.b16 %v1467
          %v1504 = vunpack.c.l.b16 %v1468
          %v1505 = vunpack.c.l.b16 %v1469
          %v1506 = vunpack.c.l.b16 %v1470
          %v1507 = vunpack.c.l.b16 %v1471
          %v1508 = vunpack.c.l.b16 %v1472
          %v1509 = vunpack.c.l.b16 %v1473
          %v1510 = vunpack.c.l.b16 %v1474
          %v1511 = vunpack.c.l.b16 %v1475
          %v1512 = vunpack.c.l.b16 %v1476
          %v1513 = vunpack.c.l.b16 %v1477
          %v1514 = vunpack.c.l.b16 %v1478
          %v1515 = vunpack.c.l.b16 %v1479
          %v1516 = vunpack.c.l.b16 %v1480
          %v1517 = vunpack.c.l.b16 %v1481
          %v1518 = vunpack.c.l.b16 %v1482
          %v1519 = vpack.c.b16 %v1504, %v1503
          %v1520 = vpack.c.b16 %v1506, %v1505
          %v1521 = vpack.c.b16 %v1508, %v1507
          %v1522 = vpack.c.b16 %v1510, %v1509
          %v1523 = vpack.c.b16 %v1512, %v1511
          %v1524 = vpack.c.b16 %v1514, %v1513
          %v1525 = vpack.c.b16 %v1516, %v1515
          %v1526 = vpack.c.b16 %v1518, %v1517
          %1535 = vmatpush.bf16.msra.mxu0 %v1526
          %1536 = vmatpush.bf16.msra.mxu0 %v1525
          %1537 = vmatpush.bf16.msra.mxu0 %v1524
          %1538 = vmatpush.bf16.msra.mxu0 %v1523
          %1539 = vmatpush.bf16.msra.mxu0 %v1522
          %1540 = vmatpush.bf16.msra.mxu0 %v1521
          %1541 = vmatpush.bf16.msra.mxu0 %v1520
          %1542 = vmatpush.bf16.msra.mxu0 %v1519
          %1543 = vmatmul.bf16.gmra.mxu0 %v1466
          %v1544 = vpop.f32.mrf.mxu0
          %v1545 = vadd.f32 %v1485, %v1544
          %v1546 = vpop.f32.mrf.mxu0
          %1547 = vdwg.mxu0
          %v1548 = vpack.c.bf16 %v1545, %v1545
          %v1549 = vld [vmem:[%s12] sm:$0xf]
          %v1550 = vld [vmem:[%s12 + $0x4] sm:$0xf]
          %v1551 = vld [vmem:[%s12 + $0x8] sm:$0xf]
          %v1552 = vld [vmem:[%s12 + $0xc] sm:$0xf]
          %v1553 = vld [vmem:[%s12 + $0x10] sm:$0xf]
          %v1554 = vld [vmem:[%s12 + $0x14] sm:$0xf]
          %v1555 = vld [vmem:[%s12 + $0x18] sm:$0xf]
          %v1556 = vld [vmem:[%s12 + $0x1c] sm:$0xf]
          %v1557 = vld [vmem:[%s13] sm:$0x1]
          %v1559 = vperm.slane %v1557, 0
          %v1569 = vunpack.c.l.b16 %v1549
          %v1570 = vunpack.c.l.b16 %v1550
          %v1571 = vunpack.c.l.b16 %v1551
          %v1572 = vunpack.c.l.b16 %v1552
          %v1573 = vunpack.c.l.b16 %v1553
          %v1574 = vunpack.c.l.b16 %v1554
          %v1575 = vunpack.c.l.b16 %v1555
          %v1576 = vunpack.c.l.b16 %v1556
          %v1577 = vpack.c.b16 %v1570, %v1569
          %v1578 = vpack.c.b16 %v1572, %v1571
          %v1579 = vpack.c.b16 %v1574, %v1573
          %v1580 = vpack.c.b16 %v1576, %v1575
          %vm1585 = vcmask 523264
          %v1587 = vsel %vm1585, %v1548, 0
          %1589 = vmatpush.bf16.msra.mxu0 0
          %1590 = vmatpush.bf16.msra.mxu0 0
          %1591 = vmatpush.bf16.msra.mxu0 0
          %1592 = vmatpush.bf16.msra.mxu0 0
          %1593 = vmatpush.bf16.msra.mxu0 %v1580
          %1594 = vmatpush.bf16.msra.mxu0 %v1579
          %1595 = vmatpush.bf16.msra.mxu0 %v1578
          %1596 = vmatpush.bf16.msra.mxu0 %v1577
          %1597 = vmatmul.bf16.gmra.mxu0 %v1587
          %v1598 = vpop.f32.mrf.mxu0
          %v1599 = vadd.f32 %v1559, %v1598
          %v1600 = vpop.f32.mrf.mxu0
          %1601 = vdwg.mxu0
          %1602 = vst [vmem:[#allocation2] sm:$0xff] %v1599
        $region111: #{decoder_forward.1} parent=102 // pred_fallthru
          _
        %v1603 = vld [vmem:[#allocation2] sm:$0xff]
        %v1604 = vpack.c.bf16 %v1603, %v1603
        %v1605 = vld [vmem:[%s585] sm:$0xff]
        %v1606 = vld [vmem:[%s585 + $0x8] sm:$0xff]
        %v1607 = vld [vmem:[%s585 + $0x10] sm:$0xff]
        %v1608 = vld [vmem:[%s585 + $0x18] sm:$0xff]
        %v1609 = vld [vmem:[%s585 + $0x20] sm:$0xff]
        %v1610 = vld [vmem:[%s585 + $0x28] sm:$0xff]
        %v1611 = vld [vmem:[%s585 + $0x30] sm:$0xff]
        %v1612 = vld [vmem:[%s585 + $0x38] sm:$0xff]
        %v1613 = vld [vmem:[%s585 + $0x40] sm:$0xff]
        %v1614 = vld [vmem:[%s585 + $0x48] sm:$0xff]
        %v1615 = vld [vmem:[%s585 + $0x50] sm:$0xff]
        %v1616 = vld [vmem:[%s585 + $0x58] sm:$0xff]
        %v1617 = vld [vmem:[%s585 + $0x60] sm:$0xff]
        %v1618 = vld [vmem:[%s585 + $0x68] sm:$0xff]
        %v1619 = vld [vmem:[%s585 + $0x70] sm:$0xff]
        %v1620 = vld [vmem:[%s585 + $0x78] sm:$0xff]
        %v1621 = vld [vmem:[%s585 + $0x80] sm:$0xff]
        %v1622 = vld [vmem:[%s585 + $0x88] sm:$0xff]
        %v1623 = vld [vmem:[%s585 + $0x90] sm:$0xff]
        %v1624 = vld [vmem:[%s585 + $0x98] sm:$0xff]
        %v1625 = vld [vmem:[%s585 + $0xa0] sm:$0xff]
        %v1626 = vld [vmem:[%s585 + $0xa8] sm:$0xff]
        %v1627 = vld [vmem:[%s585 + $0xb0] sm:$0xff]
        %v1628 = vld [vmem:[%s585 + $0xb8] sm:$0xff]
        %v1629 = vld [vmem:[%s585 + $0xc0] sm:$0xff]
        %v1630 = vld [vmem:[%s585 + $0xc8] sm:$0xff]
        %v1631 = vld [vmem:[%s585 + $0xd0] sm:$0xff]
        %v1632 = vld [vmem:[%s585 + $0xd8] sm:$0xff]
        %v1633 = vld [vmem:[%s585 + $0xe0] sm:$0xff]
        %v1634 = vld [vmem:[%s585 + $0xe8] sm:$0xff]
        %v1635 = vld [vmem:[%s585 + $0xf0] sm:$0xff]
        %v1636 = vld [vmem:[%s585 + $0xf8] sm:$0xff]
        %v1637 = vld [vmem:[%s642] sm:$0xf]
        %v1639 = vperm.slane %v1637, 0
        %v1640 = vperm.slane %v1637, 1
        %v1641 = vperm.slane %v1637, 2
        %v1642 = vperm.slane %v1637, 3
        %v1679 = vunpack.c.l.b16 %v1605
        %v1680 = vunpack.c.h.b16 %v1605
        %v1681 = vunpack.c.l.b16 %v1606
        %v1682 = vunpack.c.h.b16 %v1606
        %v1683 = vunpack.c.l.b16 %v1607
        %v1684 = vunpack.c.h.b16 %v1607
        %v1685 = vunpack.c.l.b16 %v1608
        %v1686 = vunpack.c.h.b16 %v1608
        %v1687 = vunpack.c.l.b16 %v1609
        %v1688 = vunpack.c.h.b16 %v1609
        %v1689 = vunpack.c.l.b16 %v1610
        %v1690 = vunpack.c.h.b16 %v1610
        %v1691 = vunpack.c.l.b16 %v1611
        %v1692 = vunpack.c.h.b16 %v1611
        %v1693 = vunpack.c.l.b16 %v1612
        %v1694 = vunpack.c.h.b16 %v1612
        %v1695 = vunpack.c.l.b16 %v1613
        %v1696 = vunpack.c.h.b16 %v1613
        %v1697 = vunpack.c.l.b16 %v1614
        %v1698 = vunpack.c.h.b16 %v1614
        %v1699 = vunpack.c.l.b16 %v1615
        %v1700 = vunpack.c.h.b16 %v1615
        %v1701 = vunpack.c.l.b16 %v1616
        %v1702 = vunpack.c.h.b16 %v1616
        %v1703 = vunpack.c.l.b16 %v1617
        %v1704 = vunpack.c.h.b16 %v1617
        %v1705 = vunpack.c.l.b16 %v1618
        %v1706 = vunpack.c.h.b16 %v1618
        %v1707 = vunpack.c.l.b16 %v1619
        %v1708 = vunpack.c.h.b16 %v1619
        %v1709 = vunpack.c.l.b16 %v1620
        %v1710 = vunpack.c.h.b16 %v1620
        %v1711 = vunpack.c.l.b16 %v1621
        %v1712 = vunpack.c.h.b16 %v1621
        %v1713 = vunpack.c.l.b16 %v1622
        %v1714 = vunpack.c.h.b16 %v1622
        %v1715 = vunpack.c.l.b16 %v1623
        %v1716 = vunpack.c.h.b16 %v1623
        %v1717 = vunpack.c.l.b16 %v1624
        %v1718 = vunpack.c.h.b16 %v1624
        %v1719 = vunpack.c.l.b16 %v1625
        %v1720 = vunpack.c.h.b16 %v1625
        %v1721 = vunpack.c.l.b16 %v1626
        %v1722 = vunpack.c.h.b16 %v1626
        %v1723 = vunpack.c.l.b16 %v1627
        %v1724 = vunpack.c.h.b16 %v1627
        %v1725 = vunpack.c.l.b16 %v1628
        %v1726 = vunpack.c.h.b16 %v1628
        %v1727 = vunpack.c.l.b16 %v1629
        %v1728 = vunpack.c.h.b16 %v1629
        %v1729 = vunpack.c.l.b16 %v1630
        %v1730 = vunpack.c.h.b16 %v1630
        %v1731 = vunpack.c.l.b16 %v1631
        %v1732 = vunpack.c.h.b16 %v1631
        %v1733 = vunpack.c.l.b16 %v1632
        %v1734 = vunpack.c.h.b16 %v1632
        %v1735 = vunpack.c.l.b16 %v1633
        %v1736 = vunpack.c.h.b16 %v1633
        %v1737 = vunpack.c.l.b16 %v1634
        %v1738 = vunpack.c.h.b16 %v1634
        %v1739 = vunpack.c.l.b16 %v1635
        %v1740 = vunpack.c.h.b16 %v1635
        %v1741 = vunpack.c.l.b16 %v1636
        %v1742 = vunpack.c.h.b16 %v1636
        %v1743 = vpack.c.b16 %v1683, %v1679
        %v1744 = vpack.c.b16 %v1684, %v1680
        %v1745 = vpack.c.b16 %v1685, %v1681
        %v1746 = vpack.c.b16 %v1686, %v1682
        %v1747 = vpack.c.b16 %v1691, %v1687
        %v1748 = vpack.c.b16 %v1692, %v1688
        %v1749 = vpack.c.b16 %v1693, %v1689
        %v1750 = vpack.c.b16 %v1694, %v1690
        %v1751 = vpack.c.b16 %v1699, %v1695
        %v1752 = vpack.c.b16 %v1700, %v1696
        %v1753 = vpack.c.b16 %v1701, %v1697
        %v1754 = vpack.c.b16 %v1702, %v1698
        %v1755 = vpack.c.b16 %v1707, %v1703
        %v1756 = vpack.c.b16 %v1708, %v1704
        %v1757 = vpack.c.b16 %v1709, %v1705
        %v1758 = vpack.c.b16 %v1710, %v1706
        %v1759 = vpack.c.b16 %v1715, %v1711
        %v1760 = vpack.c.b16 %v1716, %v1712
        %v1761 = vpack.c.b16 %v1717, %v1713
        %v1762 = vpack.c.b16 %v1718, %v1714
        %v1763 = vpack.c.b16 %v1723, %v1719
        %v1764 = vpack.c.b16 %v1724, %v1720
        %v1765 = vpack.c.b16 %v1725, %v1721
        %v1766 = vpack.c.b16 %v1726, %v1722
        %v1767 = vpack.c.b16 %v1731, %v1727
        %v1768 = vpack.c.b16 %v1732, %v1728
        %v1769 = vpack.c.b16 %v1733, %v1729
        %v1770 = vpack.c.b16 %v1734, %v1730
        %v1771 = vpack.c.b16 %v1739, %v1735
        %v1772 = vpack.c.b16 %v1740, %v1736
        %v1773 = vpack.c.b16 %v1741, %v1737
        %v1774 = vpack.c.b16 %v1742, %v1738
        %1807 = vmatpush.bf16.msra.mxu0 %v1771
        %1808 = vmatpush.bf16.msra.mxu0 %v1767
        %1809 = vmatpush.bf16.msra.mxu0 %v1763
        %1810 = vmatpush.bf16.msra.mxu0 %v1759
        %1811 = vmatpush.bf16.msra.mxu0 %v1755
        %1812 = vmatpush.bf16.msra.mxu0 %v1751
        %1813 = vmatpush.bf16.msra.mxu0 %v1747
        %1814 = vmatpush.bf16.msra.mxu0 %v1743
        %1815 = vmatmul.bf16.gmra.mxu0 %v1604
        %v1816 = vpop.f32.mrf.mxu0
        %v1817 = vadd.f32 %v1639, %v1816
        %v1818 = vpop.f32.mrf.mxu0
        %1819 = vdwg.mxu0
        %1820 = vmatpush.bf16.msra.mxu0 %v1772
        %1821 = vmatpush.bf16.msra.mxu0 %v1768
        %1822 = vmatpush.bf16.msra.mxu0 %v1764
        %1823 = vmatpush.bf16.msra.mxu0 %v1760
        %1824 = vmatpush.bf16.msra.mxu0 %v1756
        %1825 = vmatpush.bf16.msra.mxu0 %v1752
        %1826 = vmatpush.bf16.msra.mxu0 %v1748
        %1827 = vmatpush.bf16.msra.mxu0 %v1744
        %1828 = vmatmul.bf16.gmra.mxu0 %v1604
        %v1829 = vpop.f32.mrf.mxu0
        %v1830 = vadd.f32 %v1640, %v1829
        %v1831 = vpop.f32.mrf.mxu0
        %1832 = vdwg.mxu0
        %1833 = vmatpush.bf16.msra.mxu0 %v1773
        %1834 = vmatpush.bf16.msra.mxu0 %v1769
        %1835 = vmatpush.bf16.msra.mxu0 %v1765
        %1836 = vmatpush.bf16.msra.mxu0 %v1761
        %1837 = vmatpush.bf16.msra.mxu0 %v1757
        %1838 = vmatpush.bf16.msra.mxu0 %v1753
        %1839 = vmatpush.bf16.msra.mxu0 %v1749
        %1840 = vmatpush.bf16.msra.mxu0 %v1745
        %1841 = vmatmul.bf16.gmra.mxu0 %v1604
        %v1842 = vpop.f32.mrf.mxu0
        %v1843 = vadd.f32 %v1641, %v1842
        %v1844 = vpop.f32.mrf.mxu0
        %1845 = vdwg.mxu0
        %1846 = vmatpush.bf16.msra.mxu0 %v1774
        %1847 = vmatpush.bf16.msra.mxu0 %v1770
        %1848 = vmatpush.bf16.msra.mxu0 %v1766
        %1849 = vmatpush.bf16.msra.mxu0 %v1762
        %1850 = vmatpush.bf16.msra.mxu0 %v1758
        %1851 = vmatpush.bf16.msra.mxu0 %v1754
        %1852 = vmatpush.bf16.msra.mxu0 %v1750
        %1853 = vmatpush.bf16.msra.mxu0 %v1746
        %1854 = vmatmul.bf16.gmra.mxu0 %v1604
        %v1855 = vpop.f32.mrf.mxu0
        %v1856 = vadd.f32 %v1642, %v1855
        %v1857 = vpop.f32.mrf.mxu0
        %1858 = vdwg.mxu0
        %1859 = vst [vmem:[%s648] sm:$0xff] %v1817
        %1860 = vst [vmem:[%s648 + $0x8] sm:$0xff] %v1830
        %1861 = vst [vmem:[%s648 + $0x10] sm:$0xff] %v1843
        %1862 = vst [vmem:[%s648 + $0x18] sm:$0xff] %v1856
        %s1863 = smul.u32 4, %s29
        %p1864 = scmp.lt.s32.totalorder %s1863, 15
        %s1865 = scalar_select %p1864, %s1863, 15
        %s1866 = smul.addr %s1865, 8
        %s1867 = scalar_lea.vmem %s16, %s1866
        // Predicated region
        $region112: #{decoder_forward.1} parent=102 // pred_check
          %p1868 = pneg %p393
        $region113: #{decoder_forward.1} parent=102 // pred_check_branch
          %1870 = sbr.rel (%p1868) target = $region115
        $region114: #{decoder_forward.1} parent=102 // pred_region
          %s1871 = smul.u32 4, %s29
        $region115: #{decoder_forward.1} parent=102 // pred_fallthru
          _
        // Predicated region
        $region116: #{decoder_forward.1} parent=102 // pred_check
          %p1872 = pneg %p414
        $region117: #{decoder_forward.1} parent=102 // pred_check_branch
          %1874 = sbr.rel (%p1872) target = $region119
        $region118: #{decoder_forward.1} parent=102 // pred_region
          _
        $region119: #{decoder_forward.1} parent=102 // pred_fallthru
          _
        // Predicated region
        $region120: #{decoder_forward.1} parent=102 // pred_check
          %p1875 = pneg %p414
        $region121: #{decoder_forward.1} parent=102 // pred_check_branch
          %1877 = sbr.rel (%p1875) target = $region123
        $region122: #{decoder_forward.1} parent=102 // pred_region
          _
        $region123: #{decoder_forward.1} parent=102 // pred_fallthru
          _
      $region103: #{decoder_forward.1} parent=5 // pred_fallthru
        _
      %p1878 = scmp.le.s32.totalorder 2, %s24
      // Predicated region
      $region124: #{decoder_forward.1} parent=5 // pred_check
        %p1879 = pneg %p1878
      $region125: #{decoder_forward.1} parent=5 // pred_check_branch
        %1881 = sbr.rel (%p1879) target = $region127
      $region126: #{decoder_forward.1} parent=5 // pred_region
        %s1882 = ssub.s32 %s24, 2
        // Predicated region
        $region128: #{decoder_forward.1} parent=126 // pred_check
          %p1883 = pneg %p399
        $region129: #{decoder_forward.1} parent=126 // pred_check_branch
          %1885 = sbr.rel (%p1883) target = $region131
        $region130: #{decoder_forward.1} parent=126 // pred_region
          %s1886 = smul.u32 4, %s30
          %p1887 = scmp.lt.s32.totalorder %s1886, 15
          %s1888 = scalar_select %p1887, %s1886, 15
          %s1889 = smul.addr %s1888, 8
          %s1890 = scalar_lea.vmem %s16, %s1889
        $region131: #{decoder_forward.1} parent=126 // pred_fallthru
          _
      $region127: #{decoder_forward.1} parent=5 // pred_fallthru
        _
    $region6: #{decoder_forward.1} parent=1 // loop_footer
      %s28 = sadd.s32 1, %s24
    $region7: #{decoder_forward.1} parent=1 // loop_footer_branch
      %23 = sbr.rel target = $region3
    $region8: #{decoder_forward.1} parent=1 // loop_exit
      _

</llo_original>
